<compile_context>
chip_gen: v7x
topology: tpu7x:2x2x1
jax: 0.10.0
libtpu: 0.0.40
codegen_flags: <defaults>
</compile_context>

<pallas_src>
import jax
import jax.numpy as jnp
import numpy as np
from jax.experimental import pallas as pl
from jax.experimental.pallas import tpu as pltpu

# ---------------- model sizes (small, consistent with the module) ----------------
BATCH = 4            # number of graphs per batch
SEQ_LEN = 5          # sequence_length in the reference script
NUM_AGENTS = 3       # nodes with categories == 0 (agents occupy node indices [0, NUM_AGENTS))
NUM_LANDMARKS = 5
N_NODES = NUM_AGENTS + NUM_LANDMARKS   # nodes per graph (agents first)
IN_CH = 6            # in_channels
HID = 32             # hidden_channels
OUT_CH = 2           # out_channels (predicted 2-D positions)


# ---------------- host-side one-time preparation ----------------
def prepare_kernel_params(params, a_hat, batch, seq_len):
    """One-time prep so the jitted forward is exactly one pallas_call.

    a1: block-diagonal kron(I_{B*T}, A_hat)  -> each GCN layer is a single matmul.
    a2: layer-2 aggregation rows restricted to agent nodes AND pre-permuted into the exact
        row order PyTorch's `.view(batch*num_agents, T, H)` feeds the GRU (time-major blocks
        of size R = batch*num_agents), so the kernel needs no in-kernel gather/reshape.
    GRU weights stay packed (H, 3H) in gate order r|z|n; the r/z portions of bhh are folded
    into bih host-side (bhh_n must remain inside the r*(...) term).
    """
    H, A = HID, NUM_AGENTS
    N = int(a_hat.shape[0])
    S = batch * seq_len              # number of graph snapshots
    R = batch * A                    # GRU batch rows

    a_np = np.asarray(a_hat, np.float32)
    a1 = np.kron(np.eye(S, dtype=np.float32), a_np)            # (S*N, S*N)

    # z row q = t*R + r must equal agent-embedding flat element e = r*T + t (flat (b,t,a)
    # order), i.e. full-node row s*N + a with s = e // A, a = e % A.
    perm = np.empty(seq_len * R, dtype=np.int64)
    for q in range(seq_len * R):
        t, r = divmod(q, R)
        e = r * seq_len + t
        s, ag = divmod(e, A)
        perm[q] = s * N + ag
    a2 = a1[perm]                                              # (T*R, S*N)

    bih = np.asarray(params["bih"], np.float32)                # (1, 3H)
    bhh = np.asarray(params["bhh"], np.float32)                # (1, 3H)
    bias_i3 = bih.copy()
    bias_i3[:, : 2 * H] += bhh[:, : 2 * H]                     # fold r/z hidden biases
    bias_hn = bhh[:, 2 * H:]                                   # stays inside r * (...)

    return {
        "a1": jnp.asarray(a1), "a2": jnp.asarray(a2),
        "w1": params["w1"], "b1": params["b1"],
        "w2": params["w2"], "b2": params["b2"],
        "wih": params["wih"], "whh": params["whh"],            # packed (H, 3H), gates r|z|n
        "bias_i3": jnp.asarray(bias_i3),                       # (1, 3H)
        "bias_hn": jnp.asarray(bias_hn),                       # (1, H)
        "wl": params["wl"], "bl": params["bl"],
    }


# ---------------- fused Pallas forward ----------------
def gnn_gru_forward(x_seq, kp):
    """x_seq: (B, T, N, Cin) float32 -> (B, NUM_AGENTS, OUT_CH) float32."""
    B, T, N, Cin = x_seq.shape
    A, H, O = NUM_AGENTS, HID, OUT_CH
    R = B * A                # GRU batch rows
    SN = B * T * N           # total node rows across all snapshots
    TR = T * R               # total agent rows (== B*T*A)

    x_rows = x_seq.reshape(SN, Cin)          # rows ordered (b, t, n); free metadata reshape

    def kernel(x_ref, a1_ref, a2_ref, w1_ref, b1_ref, w2_ref, b2_ref,
               wih_ref, whh_ref, bi3_ref, bhn_ref, wl_ref, bl_ref, out_ref):
        # ---- GCN layer 1, reassociated: (A1 @ X) @ W1 (K=Cin for the big aggregation) ----
        ax = jnp.dot(a1_ref[...], x_ref[...], preferred_element_type=jnp.float32)   # (SN, Cin)
        h1 = jnp.dot(ax, w1_ref[...], preferred_element_type=jnp.float32) + b1_ref[...]
        h1 = jnp.maximum(h1, 0.0)                                                    # (SN, H)

        # ---- GCN layer 2, reassociated: (A2 @ H1) @ W2. A2 already selects agent nodes and
        # permutes rows into PyTorch's .view(B*A, T, H) GRU feed order (time-major blocks). --
        ah = jnp.dot(a2_ref[...], h1, preferred_element_type=jnp.float32)            # (TR, H)
        z = jnp.dot(ah, w2_ref[...], preferred_element_type=jnp.float32) + b2_ref[...]
        z = jnp.maximum(z, 0.0)                                                      # (TR, H)

        # ---- GRU: input projections hoisted out of the recurrence (one (TR,H)x(H,3H) matmul,
        # biases pre-folded for the r|z gates), then T serial fused hidden-state matmuls. ----
        gi_all = jnp.dot(z, wih_ref[...],
                         preferred_element_type=jnp.float32) + bi3_ref[...]          # (TR, 3H)

        hid = jnp.zeros((R, H), jnp.float32)
        for t in range(T):
            gi = gi_all[t * R:(t + 1) * R, :]                                        # (R, 3H)
            gh = jnp.dot(hid, whh_ref[...], preferred_element_type=jnp.float32)      # (R, 3H)
            rz = jax.nn.sigmoid(gi[:, :2 * H] + gh[:, :2 * H])                       # (R, 2H)
            rg = rz[:, :H]
            zg = rz[:, H:]
            ng = jnp.tanh(gi[:, 2 * H:] + rg * (gh[:, 2 * H:] + bhn_ref[...]))       # (R, H)
            hid = (1.0 - zg) * ng + zg * hid

        # ---- Linear head on the final hidden state ----
        out_ref[...] = jnp.dot(hid, wl_ref[...],
                               preferred_element_type=jnp.float32) + bl_ref[...]

    inputs = (x_rows, kp["a1"], kp["a2"], kp["w1"], kp["b1"], kp["w2"], kp["b2"],
              kp["wih"], kp["whh"], kp["bias_i3"], kp["bias_hn"], kp["wl"], kp["bl"])

    # FLOPs: only the non-zero block-diagonal aggregation work is counted.
    flops = 2 * (SN * N * Cin          # A1 @ X   (block-diag: N nonzeros per row)
                 + SN * Cin * H        # (A1 X) @ W1
                 + TR * N * H          # A2 @ H1  (block-diag rows: N nonzeros per row)
                 + TR * H * H          # (A2 H1) @ W2
                 + TR * H * 3 * H      # hoisted z @ wih
                 + T * R * H * 3 * H   # per-step hid @ whh
                 + R * H * O)          # linear head
    transcendentals = T * R * 3 * H                     # 2H sigmoid + H tanh per step
    bytes_accessed = 4 * (sum(int(np.prod(v.shape)) for v in inputs) + R * O)

    vmem_spec = pl.BlockSpec(memory_space=pltpu.MemorySpace.VMEM)
    out = pl.pallas_call(
        kernel,
        out_shape=jax.ShapeDtypeStruct((R, O), jnp.float32),
        in_specs=[vmem_spec] * len(inputs),
        out_specs=vmem_spec,
        cost_estimate=pl.CostEstimate(flops=flops, transcendentals=transcendentals,
                                      bytes_accessed=bytes_accessed),
    )(*inputs)

    return out.reshape(B, A, O)


# ---------------- pure-JAX reference (mirrors the PyTorch forward) ----------------
def reference_forward(x_seq, a_hat, p):
    B, T, N, Cin = x_seq.shape

    def gcn(x):
        h1 = jax.nn.relu(a_hat @ (x @ p["w1"]) + p["b1"][0])
        h2 = jax.nn.relu(a_hat @ (h1 @ p["w2"]) + p["b2"][0])
        return h2[:NUM_AGENTS]

    emb = jax.vmap(jax.vmap(gcn))(x_seq)                 # (B, T, A, H)
    z = emb.reshape(B * NUM_AGENTS, T, HID)              # PyTorch raw .view semantics

    def step(h, x_t):
        gi = x_t @ p["wih"] + p["bih"][0]
        gh = h @ p["whh"] + p["bhh"][0]
        r = jax.nn.sigmoid(gi[:, :HID] + gh[:, :HID])
        zz = jax.nn.sigmoid(gi[:, HID:2 * HID] + gh[:, HID:2 * HID])
        n = jnp.tanh(gi[:, 2 * HID:] + r * gh[:, 2 * HID:])
        return (1.0 - zz) * n + zz * h, None

    h0 = jnp.zeros((B * NUM_AGENTS, HID), jnp.float32)
    h_last, _ = jax.lax.scan(step, h0, jnp.transpose(z, (1, 0, 2)))
    out = h_last @ p["wl"] + p["bl"][0]
    return out.reshape(B, NUM_AGENTS, -1)


def make_a_hat(n):
    """Deterministic small-world-ish graph; GCN normalization D^-1/2 (A+I) D^-1/2."""
    adj = np.zeros((n, n), np.float32)
    for i in range(n):
        for d in (1, 2):
            j = (i + d) % n
            adj[i, j] = 1.0
            adj[j, i] = 1.0
    adj_sl = adj + np.eye(n, dtype=np.float32)
    deg = adj_sl.sum(1)
    dinv = 1.0 / np.sqrt(deg)
    return jnp.asarray(dinv[:, None] * adj_sl * dinv[None, :], jnp.float32)


def init_params(key):
    ks = jax.random.split(key, 10)
    return {
        "w1": jax.random.normal(ks[0], (IN_CH, HID), jnp.float32) * 0.1,
        "b1": jax.random.normal(ks[1], (1, HID), jnp.float32) * 0.01,
        "w2": jax.random.normal(ks[2], (HID, HID), jnp.float32) * 0.1,
        "b2": jax.random.normal(ks[3], (1, HID), jnp.float32) * 0.01,
        # PyTorch GRU weights are (3H, H); stored transposed (H, 3H), gate order r|z|n.
        "wih": jax.random.normal(ks[4], (HID, 3 * HID), jnp.float32) * 0.1,
        "whh": jax.random.normal(ks[5], (HID, 3 * HID), jnp.float32) * 0.1,
        "bih": jax.random.normal(ks[6], (1, 3 * HID), jnp.float32) * 0.01,
        "bhh": jax.random.normal(ks[7], (1, 3 * HID), jnp.float32) * 0.01,
        # Linear: PyTorch weight (out, in); stored transposed (in, out).
        "wl": jax.random.normal(ks[8], (HID, OUT_CH), jnp.float32) * 0.1,
        "bl": jax.random.normal(ks[9], (1, OUT_CH), jnp.float32) * 0.01,
    }


if __name__ == "__main__":
    key = jax.random.PRNGKey(0)
    pkey, xkey = jax.random.split(key)
    params = init_params(pkey)
    a_hat = make_a_hat(N_NODES)
    x_seq = jax.random.normal(xkey, (BATCH, SEQ_LEN, N_NODES, IN_CH), jnp.float32)

    kp = prepare_kernel_params(params, a_hat, BATCH, SEQ_LEN)   # one-time host-side prep

    out = jax.jit(gnn_gru_forward)(x_seq, kp)
    out = jax.block_until_ready(out)

    ref = reference_forward(x_seq, a_hat, params)
    assert out.shape == (BATCH, NUM_AGENTS, OUT_CH), out.shape
    np.testing.assert_allclose(np.asarray(out), np.asarray(ref), rtol=1e-4, atol=1e-4)

    print("KERNEL_OK")
</pallas_src>

<mosaic_0001>
module attributes {stable_mosaic.version = 11 : i64} {
  func.func @kernel(%arg0: memref<160x6xf32, #tpu.memory_space<vmem>>, %arg1: memref<160x160xf32, #tpu.memory_space<vmem>>, %arg2: memref<60x160xf32, #tpu.memory_space<vmem>>, %arg3: memref<6x32xf32, #tpu.memory_space<vmem>>, %arg4: memref<1x32xf32, #tpu.memory_space<vmem>>, %arg5: memref<32x32xf32, #tpu.memory_space<vmem>>, %arg6: memref<1x32xf32, #tpu.memory_space<vmem>>, %arg7: memref<32x96xf32, #tpu.memory_space<vmem>>, %arg8: memref<32x96xf32, #tpu.memory_space<vmem>>, %arg9: memref<1x96xf32, #tpu.memory_space<vmem>>, %arg10: memref<1x32xf32, #tpu.memory_space<vmem>>, %arg11: memref<32x2xf32, #tpu.memory_space<vmem>>, %arg12: memref<1x2xf32, #tpu.memory_space<vmem>>, %arg13: memref<12x2xf32, #tpu.memory_space<vmem>>) attributes {dimension_semantics = [], scalar_prefetch = 0 : i64, scratch_operands = 0 : i64, tpu.core_type = #tpu.core_type<tc>} {
    %c0 = arith.constant 0 : index
    %c0_0 = arith.constant 0 : index
    %0 = vector.load %arg1[%c0, %c0_0] : memref<160x160xf32, #tpu.memory_space<vmem>>, vector<160x160xf32>
    %c0_1 = arith.constant 0 : index
    %c0_2 = arith.constant 0 : index
    %1 = vector.load %arg0[%c0_1, %c0_2] : memref<160x6xf32, #tpu.memory_space<vmem>>, vector<160x6xf32>
    %cst = arith.constant dense<0.000000e+00> : vector<160x6xf32>
    %2 = tpu.matmul %0, %1, %cst {dimension_numbers = #tpu.dot_dimension_numbers<[1], [0], [0], [1], [0, 0, 1, 1], [], []>} : vector<160x160xf32>, vector<160x6xf32>, vector<160x6xf32> -> vector<160x6xf32>
    %c0_3 = arith.constant 0 : index
    %c0_4 = arith.constant 0 : index
    %3 = vector.load %arg3[%c0_3, %c0_4] : memref<6x32xf32, #tpu.memory_space<vmem>>, vector<6x32xf32>
    %cst_5 = arith.constant dense<0.000000e+00> : vector<160x32xf32>
    %4 = tpu.matmul %2, %3, %cst_5 {dimension_numbers = #tpu.dot_dimension_numbers<[1], [0], [0], [1], [0, 0, 1, 1], [], []>} : vector<160x6xf32>, vector<6x32xf32>, vector<160x32xf32> -> vector<160x32xf32>
    %c0_6 = arith.constant 0 : index
    %c0_7 = arith.constant 0 : index
    %5 = vector.load %arg4[%c0_6, %c0_7] : memref<1x32xf32, #tpu.memory_space<vmem>>, vector<1x32xf32>
    %6 = vector.broadcast %5 : vector<1x32xf32> to vector<160x32xf32>
    %7 = arith.addf %4, %6 : vector<160x32xf32>
    %cst_8 = arith.constant 0.000000e+00 : f32
    %8 = vector.broadcast %cst_8 : f32 to vector<160x32xf32>
    %9 = arith.maximumf %7, %8 : vector<160x32xf32>
    %c0_9 = arith.constant 0 : index
    %c0_10 = arith.constant 0 : index
    %10 = vector.load %arg2[%c0_9, %c0_10] : memref<60x160xf32, #tpu.memory_space<vmem>>, vector<60x160xf32>
    %cst_11 = arith.constant dense<0.000000e+00> : vector<60x32xf32>
    %11 = tpu.matmul %10, %9, %cst_11 {dimension_numbers = #tpu.dot_dimension_numbers<[1], [0], [0], [1], [0, 0, 1, 1], [], []>} : vector<60x160xf32>, vector<160x32xf32>, vector<60x32xf32> -> vector<60x32xf32>
    %c0_12 = arith.constant 0 : index
    %c0_13 = arith.constant 0 : index
    %12 = vector.load %arg5[%c0_12, %c0_13] : memref<32x32xf32, #tpu.memory_space<vmem>>, vector<32x32xf32>
    %cst_14 = arith.constant dense<0.000000e+00> : vector<60x32xf32>
    %13 = tpu.matmul %11, %12, %cst_14 {dimension_numbers = #tpu.dot_dimension_numbers<[1], [0], [0], [1], [0, 0, 1, 1], [], []>} : vector<60x32xf32>, vector<32x32xf32>, vector<60x32xf32> -> vector<60x32xf32>
    %c0_15 = arith.constant 0 : index
    %c0_16 = arith.constant 0 : index
    %14 = vector.load %arg6[%c0_15, %c0_16] : memref<1x32xf32, #tpu.memory_space<vmem>>, vector<1x32xf32>
    %15 = vector.broadcast %14 : vector<1x32xf32> to vector<60x32xf32>
    %16 = arith.addf %13, %15 : vector<60x32xf32>
    %cst_17 = arith.constant 0.000000e+00 : f32
    %17 = vector.broadcast %cst_17 : f32 to vector<60x32xf32>
    %18 = arith.maximumf %16, %17 : vector<60x32xf32>
    %c0_18 = arith.constant 0 : index
    %c0_19 = arith.constant 0 : index
    %19 = vector.load %arg7[%c0_18, %c0_19] : memref<32x96xf32, #tpu.memory_space<vmem>>, vector<32x96xf32>
    %cst_20 = arith.constant dense<0.000000e+00> : vector<60x96xf32>
    %20 = tpu.matmul %18, %19, %cst_20 {dimension_numbers = #tpu.dot_dimension_numbers<[1], [0], [0], [1], [0, 0, 1, 1], [], []>} : vector<60x32xf32>, vector<32x96xf32>, vector<60x96xf32> -> vector<60x96xf32>
    %c0_21 = arith.constant 0 : index
    %c0_22 = arith.constant 0 : index
    %21 = vector.load %arg9[%c0_21, %c0_22] : memref<1x96xf32, #tpu.memory_space<vmem>>, vector<1x96xf32>
    %22 = vector.broadcast %21 : vector<1x96xf32> to vector<60x96xf32>
    %23 = arith.addf %20, %22 : vector<60x96xf32>
    %cst_23 = arith.constant 0.000000e+00 : f32
    %24 = vector.broadcast %cst_23 : f32 to vector<12x32xf32>
    %25 = vector.extract_strided_slice %23 {offsets = [0, 0], sizes = [12, 96], strides = [1, 1]} : vector<60x96xf32> to vector<12x96xf32>
    %c0_24 = arith.constant 0 : index
    %c0_25 = arith.constant 0 : index
    %26 = vector.load %arg8[%c0_24, %c0_25] : memref<32x96xf32, #tpu.memory_space<vmem>>, vector<32x96xf32>
    %cst_26 = arith.constant dense<0.000000e+00> : vector<12x96xf32>
    %27 = tpu.matmul %24, %26, %cst_26 {dimension_numbers = #tpu.dot_dimension_numbers<[1], [0], [0], [1], [0, 0, 1, 1], [], []>} : vector<12x32xf32>, vector<32x96xf32>, vector<12x96xf32> -> vector<12x96xf32>
    %28 = vector.extract_strided_slice %25 {offsets = [0, 0], sizes = [12, 64], strides = [1, 1]} : vector<12x96xf32> to vector<12x64xf32>
    %29 = vector.extract_strided_slice %27 {offsets = [0, 0], sizes = [12, 64], strides = [1, 1]} : vector<12x96xf32> to vector<12x64xf32>
    %30 = arith.addf %28, %29 : vector<12x64xf32>
    %31 = arith.negf %30 : vector<12x64xf32>
    %32 = math.exp %31 : vector<12x64xf32>
    %cst_27 = arith.constant 1.000000e+00 : f32
    %33 = vector.broadcast %cst_27 : f32 to vector<12x64xf32>
    %34 = arith.addf %33, %32 : vector<12x64xf32>
    %35 = arith.divf %33, %34 : vector<12x64xf32>
    %36 = vector.extract_strided_slice %35 {offsets = [0, 0], sizes = [12, 32], strides = [1, 1]} : vector<12x64xf32> to vector<12x32xf32>
    %37 = vector.extract_strided_slice %35 {offsets = [0, 32], sizes = [12, 32], strides = [1, 1]} : vector<12x64xf32> to vector<12x32xf32>
    %38 = vector.extract_strided_slice %25 {offsets = [0, 64], sizes = [12, 32], strides = [1, 1]} : vector<12x96xf32> to vector<12x32xf32>
    %39 = vector.extract_strided_slice %27 {offsets = [0, 64], sizes = [12, 32], strides = [1, 1]} : vector<12x96xf32> to vector<12x32xf32>
    %c0_28 = arith.constant 0 : index
    %c0_29 = arith.constant 0 : index
    %40 = vector.load %arg10[%c0_28, %c0_29] : memref<1x32xf32, #tpu.memory_space<vmem>>, vector<1x32xf32>
    %41 = vector.broadcast %40 : vector<1x32xf32> to vector<12x32xf32>
    %42 = arith.addf %39, %41 : vector<12x32xf32>
    %43 = arith.mulf %36, %42 : vector<12x32xf32>
    %44 = arith.addf %38, %43 : vector<12x32xf32>
    %45 = math.tanh %44 : vector<12x32xf32>
    %cst_30 = arith.constant 1.000000e+00 : f32
    %46 = vector.broadcast %cst_30 : f32 to vector<12x32xf32>
    %47 = arith.subf %46, %37 : vector<12x32xf32>
    %48 = arith.mulf %47, %45 : vector<12x32xf32>
    %49 = arith.mulf %37, %24 : vector<12x32xf32>
    %50 = arith.addf %48, %49 : vector<12x32xf32>
    %51 = vector.extract_strided_slice %23 {offsets = [12, 0], sizes = [12, 96], strides = [1, 1]} : vector<60x96xf32> to vector<12x96xf32>
    %c0_31 = arith.constant 0 : index
    %c0_32 = arith.constant 0 : index
    %52 = vector.load %arg8[%c0_31, %c0_32] : memref<32x96xf32, #tpu.memory_space<vmem>>, vector<32x96xf32>
    %cst_33 = arith.constant dense<0.000000e+00> : vector<12x96xf32>
    %53 = tpu.matmul %50, %52, %cst_33 {dimension_numbers = #tpu.dot_dimension_numbers<[1], [0], [0], [1], [0, 0, 1, 1], [], []>} : vector<12x32xf32>, vector<32x96xf32>, vector<12x96xf32> -> vector<12x96xf32>
    %54 = vector.extract_strided_slice %51 {offsets = [0, 0], sizes = [12, 64], strides = [1, 1]} : vector<12x96xf32> to vector<12x64xf32>
    %55 = vector.extract_strided_slice %53 {offsets = [0, 0], sizes = [12, 64], strides = [1, 1]} : vector<12x96xf32> to vector<12x64xf32>
    %56 = arith.addf %54, %55 : vector<12x64xf32>
    %57 = arith.negf %56 : vector<12x64xf32>
    %58 = math.exp %57 : vector<12x64xf32>
    %cst_34 = arith.constant 1.000000e+00 : f32
    %59 = vector.broadcast %cst_34 : f32 to vector<12x64xf32>
    %60 = arith.addf %59, %58 : vector<12x64xf32>
    %61 = arith.divf %59, %60 : vector<12x64xf32>
    %62 = vector.extract_strided_slice %61 {offsets = [0, 0], sizes = [12, 32], strides = [1, 1]} : vector<12x64xf32> to vector<12x32xf32>
    %63 = vector.extract_strided_slice %61 {offsets = [0, 32], sizes = [12, 32], strides = [1, 1]} : vector<12x64xf32> to vector<12x32xf32>
    %64 = vector.extract_strided_slice %51 {offsets = [0, 64], sizes = [12, 32], strides = [1, 1]} : vector<12x96xf32> to vector<12x32xf32>
    %65 = vector.extract_strided_slice %53 {offsets = [0, 64], sizes = [12, 32], strides = [1, 1]} : vector<12x96xf32> to vector<12x32xf32>
    %c0_35 = arith.constant 0 : index
    %c0_36 = arith.constant 0 : index
    %66 = vector.load %arg10[%c0_35, %c0_36] : memref<1x32xf32, #tpu.memory_space<vmem>>, vector<1x32xf32>
    %67 = vector.broadcast %66 : vector<1x32xf32> to vector<12x32xf32>
    %68 = arith.addf %65, %67 : vector<12x32xf32>
    %69 = arith.mulf %62, %68 : vector<12x32xf32>
    %70 = arith.addf %64, %69 : vector<12x32xf32>
    %71 = math.tanh %70 : vector<12x32xf32>
    %cst_37 = arith.constant 1.000000e+00 : f32
    %72 = vector.broadcast %cst_37 : f32 to vector<12x32xf32>
    %73 = arith.subf %72, %63 : vector<12x32xf32>
    %74 = arith.mulf %73, %71 : vector<12x32xf32>
    %75 = arith.mulf %63, %50 : vector<12x32xf32>
    %76 = arith.addf %74, %75 : vector<12x32xf32>
    %77 = vector.extract_strided_slice %23 {offsets = [24, 0], sizes = [12, 96], strides = [1, 1]} : vector<60x96xf32> to vector<12x96xf32>
    %c0_38 = arith.constant 0 : index
    %c0_39 = arith.constant 0 : index
    %78 = vector.load %arg8[%c0_38, %c0_39] : memref<32x96xf32, #tpu.memory_space<vmem>>, vector<32x96xf32>
    %cst_40 = arith.constant dense<0.000000e+00> : vector<12x96xf32>
    %79 = tpu.matmul %76, %78, %cst_40 {dimension_numbers = #tpu.dot_dimension_numbers<[1], [0], [0], [1], [0, 0, 1, 1], [], []>} : vector<12x32xf32>, vector<32x96xf32>, vector<12x96xf32> -> vector<12x96xf32>
    %80 = vector.extract_strided_slice %77 {offsets = [0, 0], sizes = [12, 64], strides = [1, 1]} : vector<12x96xf32> to vector<12x64xf32>
    %81 = vector.extract_strided_slice %79 {offsets = [0, 0], sizes = [12, 64], strides = [1, 1]} : vector<12x96xf32> to vector<12x64xf32>
    %82 = arith.addf %80, %81 : vector<12x64xf32>
    %83 = arith.negf %82 : vector<12x64xf32>
    %84 = math.exp %83 : vector<12x64xf32>
    %cst_41 = arith.constant 1.000000e+00 : f32
    %85 = vector.broadcast %cst_41 : f32 to vector<12x64xf32>
    %86 = arith.addf %85, %84 : vector<12x64xf32>
    %87 = arith.divf %85, %86 : vector<12x64xf32>
    %88 = vector.extract_strided_slice %87 {offsets = [0, 0], sizes = [12, 32], strides = [1, 1]} : vector<12x64xf32> to vector<12x32xf32>
    %89 = vector.extract_strided_slice %87 {offsets = [0, 32], sizes = [12, 32], strides = [1, 1]} : vector<12x64xf32> to vector<12x32xf32>
    %90 = vector.extract_strided_slice %77 {offsets = [0, 64], sizes = [12, 32], strides = [1, 1]} : vector<12x96xf32> to vector<12x32xf32>
    %91 = vector.extract_strided_slice %79 {offsets = [0, 64], sizes = [12, 32], strides = [1, 1]} : vector<12x96xf32> to vector<12x32xf32>
    %c0_42 = arith.constant 0 : index
    %c0_43 = arith.constant 0 : index
    %92 = vector.load %arg10[%c0_42, %c0_43] : memref<1x32xf32, #tpu.memory_space<vmem>>, vector<1x32xf32>
    %93 = vector.broadcast %92 : vector<1x32xf32> to vector<12x32xf32>
    %94 = arith.addf %91, %93 : vector<12x32xf32>
    %95 = arith.mulf %88, %94 : vector<12x32xf32>
    %96 = arith.addf %90, %95 : vector<12x32xf32>
    %97 = math.tanh %96 : vector<12x32xf32>
    %cst_44 = arith.constant 1.000000e+00 : f32
    %98 = vector.broadcast %cst_44 : f32 to vector<12x32xf32>
    %99 = arith.subf %98, %89 : vector<12x32xf32>
    %100 = arith.mulf %99, %97 : vector<12x32xf32>
    %101 = arith.mulf %89, %76 : vector<12x32xf32>
    %102 = arith.addf %100, %101 : vector<12x32xf32>
    %103 = vector.extract_strided_slice %23 {offsets = [36, 0], sizes = [12, 96], strides = [1, 1]} : vector<60x96xf32> to vector<12x96xf32>
    %c0_45 = arith.constant 0 : index
    %c0_46 = arith.constant 0 : index
    %104 = vector.load %arg8[%c0_45, %c0_46] : memref<32x96xf32, #tpu.memory_space<vmem>>, vector<32x96xf32>
    %cst_47 = arith.constant dense<0.000000e+00> : vector<12x96xf32>
    %105 = tpu.matmul %102, %104, %cst_47 {dimension_numbers = #tpu.dot_dimension_numbers<[1], [0], [0], [1], [0, 0, 1, 1], [], []>} : vector<12x32xf32>, vector<32x96xf32>, vector<12x96xf32> -> vector<12x96xf32>
    %106 = vector.extract_strided_slice %103 {offsets = [0, 0], sizes = [12, 64], strides = [1, 1]} : vector<12x96xf32> to vector<12x64xf32>
    %107 = vector.extract_strided_slice %105 {offsets = [0, 0], sizes = [12, 64], strides = [1, 1]} : vector<12x96xf32> to vector<12x64xf32>
    %108 = arith.addf %106, %107 : vector<12x64xf32>
    %109 = arith.negf %108 : vector<12x64xf32>
    %110 = math.exp %109 : vector<12x64xf32>
    %cst_48 = arith.constant 1.000000e+00 : f32
    %111 = vector.broadcast %cst_48 : f32 to vector<12x64xf32>
    %112 = arith.addf %111, %110 : vector<12x64xf32>
    %113 = arith.divf %111, %112 : vector<12x64xf32>
    %114 = vector.extract_strided_slice %113 {offsets = [0, 0], sizes = [12, 32], strides = [1, 1]} : vector<12x64xf32> to vector<12x32xf32>
    %115 = vector.extract_strided_slice %113 {offsets = [0, 32], sizes = [12, 32], strides = [1, 1]} : vector<12x64xf32> to vector<12x32xf32>
    %116 = vector.extract_strided_slice %103 {offsets = [0, 64], sizes = [12, 32], strides = [1, 1]} : vector<12x96xf32> to vector<12x32xf32>
    %117 = vector.extract_strided_slice %105 {offsets = [0, 64], sizes = [12, 32], strides = [1, 1]} : vector<12x96xf32> to vector<12x32xf32>
    %c0_49 = arith.constant 0 : index
    %c0_50 = arith.constant 0 : index
    %118 = vector.load %arg10[%c0_49, %c0_50] : memref<1x32xf32, #tpu.memory_space<vmem>>, vector<1x32xf32>
    %119 = vector.broadcast %118 : vector<1x32xf32> to vector<12x32xf32>
    %120 = arith.addf %117, %119 : vector<12x32xf32>
    %121 = arith.mulf %114, %120 : vector<12x32xf32>
    %122 = arith.addf %116, %121 : vector<12x32xf32>
    %123 = math.tanh %122 : vector<12x32xf32>
    %cst_51 = arith.constant 1.000000e+00 : f32
    %124 = vector.broadcast %cst_51 : f32 to vector<12x32xf32>
    %125 = arith.subf %124, %115 : vector<12x32xf32>
    %126 = arith.mulf %125, %123 : vector<12x32xf32>
    %127 = arith.mulf %115, %102 : vector<12x32xf32>
    %128 = arith.addf %126, %127 : vector<12x32xf32>
    %129 = vector.extract_strided_slice %23 {offsets = [48, 0], sizes = [12, 96], strides = [1, 1]} : vector<60x96xf32> to vector<12x96xf32>
    %c0_52 = arith.constant 0 : index
    %c0_53 = arith.constant 0 : index
    %130 = vector.load %arg8[%c0_52, %c0_53] : memref<32x96xf32, #tpu.memory_space<vmem>>, vector<32x96xf32>
    %cst_54 = arith.constant dense<0.000000e+00> : vector<12x96xf32>
    %131 = tpu.matmul %128, %130, %cst_54 {dimension_numbers = #tpu.dot_dimension_numbers<[1], [0], [0], [1], [0, 0, 1, 1], [], []>} : vector<12x32xf32>, vector<32x96xf32>, vector<12x96xf32> -> vector<12x96xf32>
    %132 = vector.extract_strided_slice %129 {offsets = [0, 0], sizes = [12, 64], strides = [1, 1]} : vector<12x96xf32> to vector<12x64xf32>
    %133 = vector.extract_strided_slice %131 {offsets = [0, 0], sizes = [12, 64], strides = [1, 1]} : vector<12x96xf32> to vector<12x64xf32>
    %134 = arith.addf %132, %133 : vector<12x64xf32>
    %135 = arith.negf %134 : vector<12x64xf32>
    %136 = math.exp %135 : vector<12x64xf32>
    %cst_55 = arith.constant 1.000000e+00 : f32
    %137 = vector.broadcast %cst_55 : f32 to vector<12x64xf32>
    %138 = arith.addf %137, %136 : vector<12x64xf32>
    %139 = arith.divf %137, %138 : vector<12x64xf32>
    %140 = vector.extract_strided_slice %139 {offsets = [0, 0], sizes = [12, 32], strides = [1, 1]} : vector<12x64xf32> to vector<12x32xf32>
    %141 = vector.extract_strided_slice %139 {offsets = [0, 32], sizes = [12, 32], strides = [1, 1]} : vector<12x64xf32> to vector<12x32xf32>
    %142 = vector.extract_strided_slice %129 {offsets = [0, 64], sizes = [12, 32], strides = [1, 1]} : vector<12x96xf32> to vector<12x32xf32>
    %143 = vector.extract_strided_slice %131 {offsets = [0, 64], sizes = [12, 32], strides = [1, 1]} : vector<12x96xf32> to vector<12x32xf32>
    %c0_56 = arith.constant 0 : index
    %c0_57 = arith.constant 0 : index
    %144 = vector.load %arg10[%c0_56, %c0_57] : memref<1x32xf32, #tpu.memory_space<vmem>>, vector<1x32xf32>
    %145 = vector.broadcast %144 : vector<1x32xf32> to vector<12x32xf32>
    %146 = arith.addf %143, %145 : vector<12x32xf32>
    %147 = arith.mulf %140, %146 : vector<12x32xf32>
    %148 = arith.addf %142, %147 : vector<12x32xf32>
    %149 = math.tanh %148 : vector<12x32xf32>
    %cst_58 = arith.constant 1.000000e+00 : f32
    %150 = vector.broadcast %cst_58 : f32 to vector<12x32xf32>
    %151 = arith.subf %150, %141 : vector<12x32xf32>
    %152 = arith.mulf %151, %149 : vector<12x32xf32>
    %153 = arith.mulf %141, %128 : vector<12x32xf32>
    %154 = arith.addf %152, %153 : vector<12x32xf32>
    %c0_59 = arith.constant 0 : index
    %c0_60 = arith.constant 0 : index
    %155 = vector.load %arg11[%c0_59, %c0_60] : memref<32x2xf32, #tpu.memory_space<vmem>>, vector<32x2xf32>
    %cst_61 = arith.constant dense<0.000000e+00> : vector<12x2xf32>
    %156 = tpu.matmul %154, %155, %cst_61 {dimension_numbers = #tpu.dot_dimension_numbers<[1], [0], [0], [1], [0, 0, 1, 1], [], []>} : vector<12x32xf32>, vector<32x2xf32>, vector<12x2xf32> -> vector<12x2xf32>
    %c0_62 = arith.constant 0 : index
    %c0_63 = arith.constant 0 : index
    %157 = vector.load %arg12[%c0_62, %c0_63] : memref<1x2xf32, #tpu.memory_space<vmem>>, vector<1x2xf32>
    %158 = vector.broadcast %157 : vector<1x2xf32> to vector<12x2xf32>
    %159 = arith.addf %156, %158 : vector<12x2xf32>
    %c0_64 = arith.constant 0 : index
    %c0_65 = arith.constant 0 : index
    %160 = vector.load %arg13[%c0_64, %c0_65] : memref<12x2xf32, #tpu.memory_space<vmem>>, vector<12x2xf32>
    tpu.vector_store %arg13[%c0_64, %c0_65], %159 {strides = array<i32>} : memref<12x2xf32, #tpu.memory_space<vmem>>, vector<12x2xf32>,
    return
  }
}

</mosaic_0001>

<llo_original>
// kernel: gnn_gru_forward.1
$region0: #{gnn_gru_forward.1}
  #allocation0 [shape = 'u32[]', space=smem, size = 0x4, offset = 0x4, fixed_abs, tag = 'smem constant byte address 0x4 - core index']
  #allocation1 [shape = 'u32[144,128]{1,0:T(1,128)}', space=vmem, size = 0x12000, scoped, tag = 'internal scratch']
  %s0 = inlined_call_operand.vmem [shape: f32[160,6], index: 0, kind: input, shape index: {}]
  %s1 = inlined_call_operand.vmem [shape: f32[160,160], index: 1, kind: input, shape index: {}]
  %s2 = inlined_call_operand.hbm [shape: f32[60,160], index: 2, kind: input, shape index: {}]
  %s3 = inlined_call_operand.hbm [shape: f32[6,32], index: 3, kind: input, shape index: {}]
  %s4 = inlined_call_operand.vmem [shape: f32[1,32], index: 4, kind: input, shape index: {}]
  %s5 = inlined_call_operand.hbm [shape: f32[32,32], index: 5, kind: input, shape index: {}]
  %s6 = inlined_call_operand.hbm [shape: f32[1,32], index: 6, kind: input, shape index: {}]
  %s7 = inlined_call_operand.vmem [shape: f32[32,96], index: 7, kind: input, shape index: {}]
  %s8 = inlined_call_operand.hbm [shape: f32[32,96], index: 8, kind: input, shape index: {}]
  %s9 = inlined_call_operand.hbm [shape: f32[1,96], index: 9, kind: input, shape index: {}]
  %s10 = inlined_call_operand.hbm [shape: f32[1,32], index: 10, kind: input, shape index: {}]
  %s11 = inlined_call_operand.vmem [shape: f32[32,2], index: 11, kind: input, shape index: {}]
  %s12 = inlined_call_operand.hbm [shape: f32[1,2], index: 12, kind: input, shape index: {}]
  %s13 = inlined_call_operand.vmem [shape: f32[12,2], index: 13, kind: output, shape index: {}]
  %s14 = sld [smem:[#allocation0]]
  $region94: #{gnn_gru_forward.1} parent=0
    _
  %s16 = ssub.s32 1, %s14
  %s17 = scalar_select 0, %s16, %s14
  $region1: #{gnn_gru_forward.1} parent=0
    #allocation2 [shape = 'u8[65536]{0}', space=vmem, size = 0x10000, scoped, tag = 'input window, operand 2, single buffered']
    #allocation3 [shape = 's32[1]{0}', space=sflag, size = 0x4, scoped, tag = 'scoped memory for gnn_gru_forward.1']
    #allocation4 [shape = 'u8[4096]{0}', space=vmem, size = 0x1000, scoped, tag = 'input window, operand 3, single buffered']
    #allocation5 [shape = 's32[1]{0}', space=sflag, size = 0x4, scoped, tag = 'scoped memory for gnn_gru_forward.1']
    #allocation6 [shape = 'u8[16384]{0}', space=vmem, size = 0x4000, scoped, tag = 'input window, operand 5, single buffered']
    #allocation7 [shape = 'u8[512]{0}', space=vmem, size = 0x400, scoped, tag = 'input window, operand 6, single buffered']
    #allocation8 [shape = 's32[1]{0}', space=sflag, size = 0x4, scoped, tag = 'scoped memory for gnn_gru_forward.1']
    #allocation9 [shape = 'u8[16384]{0}', space=vmem, size = 0x4000, scoped, tag = 'input window, operand 8, single buffered']
    #allocation10 [shape = 'u8[512]{0}', space=vmem, size = 0x400, scoped, tag = 'input window, operand 9, single buffered']
    #allocation11 [shape = 's32[1]{0}', space=sflag, size = 0x4, scoped, tag = 'scoped memory for gnn_gru_forward.1']
    #allocation12 [shape = 'u8[512]{0}', space=vmem, size = 0x400, scoped, tag = 'input window, operand 10, single buffered']
    #allocation13 [shape = 'u8[512]{0}', space=vmem, size = 0x400, scoped, tag = 'input window, operand 12, single buffered']
    #allocation14 [shape = 's32[1]{0}', space=sflag, size = 0x4, scoped, tag = 'scoped memory for gnn_gru_forward.1']
    %18 = vsyncpa [#allocation3], 0
    %19 = vsyncpa [#allocation5], 0
    %20 = vsyncpa [#allocation8], 0
    %21 = vsyncpa [#allocation11], 0
    %22 = vsyncpa [#allocation14], 0
    // Predicated region
    $region2: #{gnn_gru_forward.1} parent=1 // pred_check
      _
    $region3: #{gnn_gru_forward.1} parent=1 // pred_check_branch
      %24 = sbr.rel (0) target = $region5
    $region4: #{gnn_gru_forward.1} parent=1 // pred_region
      _
    $region5: #{gnn_gru_forward.1} parent=1 // pred_fallthru
      _
    // Predicated region
    $region6: #{gnn_gru_forward.1} parent=1 // pred_check
      _
    $region7: #{gnn_gru_forward.1} parent=1 // pred_check_branch
      %26 = sbr.rel (0) target = $region9
    $region8: #{gnn_gru_forward.1} parent=1 // pred_region
      _
    $region9: #{gnn_gru_forward.1} parent=1 // pred_fallthru
      _
    // Predicated region
    $region10: #{gnn_gru_forward.1} parent=1 // pred_check
      _
    $region11: #{gnn_gru_forward.1} parent=1 // pred_check_branch
      %28 = sbr.rel (0) target = $region13
    $region12: #{gnn_gru_forward.1} parent=1 // pred_region
      %s30 = ssub.s32 2048, 2048
      %31 = vsyncadd [#allocation3], %s30
      %s32 = sshll.u32 [#allocation2], 4
      %s33 = int_to_ptr.vmem [resolvable:$true] %s32
      %38 = dma.hbm_to_vmem [thread:$0]  %s2, 2048, %s33, [#allocation3], 256, 256, 16
    $region13: #{gnn_gru_forward.1} parent=1 // pred_fallthru
      _
    // Predicated region
    $region14: #{gnn_gru_forward.1} parent=1 // pred_check
      _
    $region15: #{gnn_gru_forward.1} parent=1 // pred_check_branch
      %40 = sbr.rel (0) target = $region17
    $region16: #{gnn_gru_forward.1} parent=1 // pred_region
      %s42 = ssub.s32 128, 128
      %43 = vsyncadd [#allocation5], %s42
      %s45 = sshll.u32 [#allocation4], 4
      %s46 = int_to_ptr.vmem [resolvable:$true] %s45
      %48 = dma.hbm_to_vmem [thread:$0]  %s3, 128, %s46, [#allocation5]
    $region17: #{gnn_gru_forward.1} parent=1 // pred_fallthru
      _
    // Predicated region
    $region18: #{gnn_gru_forward.1} parent=1 // pred_check
      _
    $region19: #{gnn_gru_forward.1} parent=1 // pred_check_branch
      %50 = sbr.rel (0) target = $region21
    $region20: #{gnn_gru_forward.1} parent=1 // pred_region
      _
    $region21: #{gnn_gru_forward.1} parent=1 // pred_fallthru
      _
    // Predicated region
    $region22: #{gnn_gru_forward.1} parent=1 // pred_check
      _
    $region23: #{gnn_gru_forward.1} parent=1 // pred_check_branch
      %52 = sbr.rel (0) target = $region25
    $region24: #{gnn_gru_forward.1} parent=1 // pred_region
      %s54 = ssub.s32 512, 512
      %55 = vsyncadd [#allocation5], %s54
      %s56 = sshll.u32 [#allocation6], 4
      %s57 = int_to_ptr.vmem [resolvable:$true] %s56
      %62 = dma.hbm_to_vmem [thread:$0]  %s5, 512, %s57, [#allocation5], 128, 128, 8
    $region25: #{gnn_gru_forward.1} parent=1 // pred_fallthru
      _
    // Predicated region
    $region26: #{gnn_gru_forward.1} parent=1 // pred_check
      _
    $region27: #{gnn_gru_forward.1} parent=1 // pred_check_branch
      %64 = sbr.rel (0) target = $region29
    $region28: #{gnn_gru_forward.1} parent=1 // pred_region
      %s66 = ssub.s32 16, 16
      %67 = vsyncadd [#allocation8], %s66
      %s69 = sshll.u32 [#allocation7], 4
      %s70 = int_to_ptr.vmem [resolvable:$true] %s69
      %72 = dma.hbm_to_vmem [thread:$0]  %s6, 16, %s70, [#allocation8]
    $region29: #{gnn_gru_forward.1} parent=1 // pred_fallthru
      _
    // Predicated region
    $region30: #{gnn_gru_forward.1} parent=1 // pred_check
      _
    $region31: #{gnn_gru_forward.1} parent=1 // pred_check_branch
      %74 = sbr.rel (0) target = $region33
    $region32: #{gnn_gru_forward.1} parent=1 // pred_region
      _
    $region33: #{gnn_gru_forward.1} parent=1 // pred_fallthru
      _
    // Predicated region
    $region34: #{gnn_gru_forward.1} parent=1 // pred_check
      _
    $region35: #{gnn_gru_forward.1} parent=1 // pred_check_branch
      %76 = sbr.rel (0) target = $region37
    $region36: #{gnn_gru_forward.1} parent=1 // pred_region
      %s78 = ssub.s32 512, 512
      %79 = vsyncadd [#allocation8], %s78
      %s80 = sshll.u32 [#allocation9], 4
      %s81 = int_to_ptr.vmem [resolvable:$true] %s80
      %86 = dma.hbm_to_vmem [thread:$0]  %s8, 512, %s81, [#allocation8], 128, 128, 8
    $region37: #{gnn_gru_forward.1} parent=1 // pred_fallthru
      _
    // Predicated region
    $region38: #{gnn_gru_forward.1} parent=1 // pred_check
      _
    $region39: #{gnn_gru_forward.1} parent=1 // pred_check_branch
      %88 = sbr.rel (0) target = $region41
    $region40: #{gnn_gru_forward.1} parent=1 // pred_region
      %s90 = ssub.s32 16, 16
      %91 = vsyncadd [#allocation11], %s90
      %s93 = sshll.u32 [#allocation10], 4
      %s94 = int_to_ptr.vmem [resolvable:$true] %s93
      %96 = dma.hbm_to_vmem [thread:$0]  %s9, 16, %s94, [#allocation11]
    $region41: #{gnn_gru_forward.1} parent=1 // pred_fallthru
      _
    // Predicated region
    $region42: #{gnn_gru_forward.1} parent=1 // pred_check
      _
    $region43: #{gnn_gru_forward.1} parent=1 // pred_check_branch
      %98 = sbr.rel (0) target = $region45
    $region44: #{gnn_gru_forward.1} parent=1 // pred_region
      %s100 = ssub.s32 16, 16
      %101 = vsyncadd [#allocation11], %s100
      %s103 = sshll.u32 [#allocation12], 4
      %s104 = int_to_ptr.vmem [resolvable:$true] %s103
      %106 = dma.hbm_to_vmem [thread:$0]  %s10, 16, %s104, [#allocation11]
    $region45: #{gnn_gru_forward.1} parent=1 // pred_fallthru
      _
    // Predicated region
    $region46: #{gnn_gru_forward.1} parent=1 // pred_check
      _
    $region47: #{gnn_gru_forward.1} parent=1 // pred_check_branch
      %108 = sbr.rel (0) target = $region49
    $region48: #{gnn_gru_forward.1} parent=1 // pred_region
      _
    $region49: #{gnn_gru_forward.1} parent=1 // pred_fallthru
      _
    // Predicated region
    $region50: #{gnn_gru_forward.1} parent=1 // pred_check
      _
    $region51: #{gnn_gru_forward.1} parent=1 // pred_check_branch
      %110 = sbr.rel (0) target = $region53
    $region52: #{gnn_gru_forward.1} parent=1 // pred_region
      %s112 = ssub.s32 16, 16
      %113 = vsyncadd [#allocation14], %s112
      %s115 = sshll.u32 [#allocation13], 4
      %s116 = int_to_ptr.vmem [resolvable:$true] %s115
      %118 = dma.hbm_to_vmem [thread:$0]  %s12, 16, %s116, [#allocation14]
    $region53: #{gnn_gru_forward.1} parent=1 // pred_fallthru
      _
    // Predicated region
    $region54: #{gnn_gru_forward.1} parent=1 // pred_check
      _
    $region55: #{gnn_gru_forward.1} parent=1 // pred_check_branch
      %120 = sbr.rel (0) target = $region57
    $region56: #{gnn_gru_forward.1} parent=1 // pred_region
      %121 = dma.done [#allocation3], 2048
    $region57: #{gnn_gru_forward.1} parent=1 // pred_fallthru
      _
    // Predicated region
    $region58: #{gnn_gru_forward.1} parent=1 // pred_check
      _
    $region59: #{gnn_gru_forward.1} parent=1 // pred_check_branch
      %123 = sbr.rel (0) target = $region61
    $region60: #{gnn_gru_forward.1} parent=1 // pred_region
      %124 = dma.done [#allocation5], 128
    $region61: #{gnn_gru_forward.1} parent=1 // pred_fallthru
      _
    // Predicated region
    $region62: #{gnn_gru_forward.1} parent=1 // pred_check
      _
    $region63: #{gnn_gru_forward.1} parent=1 // pred_check_branch
      %126 = sbr.rel (0) target = $region65
    $region64: #{gnn_gru_forward.1} parent=1 // pred_region
      %127 = dma.done [#allocation5], 512
    $region65: #{gnn_gru_forward.1} parent=1 // pred_fallthru
      _
    // Predicated region
    $region66: #{gnn_gru_forward.1} parent=1 // pred_check
      _
    $region67: #{gnn_gru_forward.1} parent=1 // pred_check_branch
      %129 = sbr.rel (0) target = $region69
    $region68: #{gnn_gru_forward.1} parent=1 // pred_region
      %130 = dma.done [#allocation8], 16
    $region69: #{gnn_gru_forward.1} parent=1 // pred_fallthru
      _
    // Predicated region
    $region70: #{gnn_gru_forward.1} parent=1 // pred_check
      _
    $region71: #{gnn_gru_forward.1} parent=1 // pred_check_branch
      %132 = sbr.rel (0) target = $region73
    $region72: #{gnn_gru_forward.1} parent=1 // pred_region
      %133 = dma.done [#allocation8], 512
    $region73: #{gnn_gru_forward.1} parent=1 // pred_fallthru
      _
    // Predicated region
    $region74: #{gnn_gru_forward.1} parent=1 // pred_check
      _
    $region75: #{gnn_gru_forward.1} parent=1 // pred_check_branch
      %135 = sbr.rel (0) target = $region77
    $region76: #{gnn_gru_forward.1} parent=1 // pred_region
      %136 = dma.done [#allocation11], 16
    $region77: #{gnn_gru_forward.1} parent=1 // pred_fallthru
      _
    // Predicated region
    $region78: #{gnn_gru_forward.1} parent=1 // pred_check
      _
    $region79: #{gnn_gru_forward.1} parent=1 // pred_check_branch
      %138 = sbr.rel (0) target = $region81
    $region80: #{gnn_gru_forward.1} parent=1 // pred_region
      %139 = dma.done [#allocation11], 16
    $region81: #{gnn_gru_forward.1} parent=1 // pred_fallthru
      _
    // Predicated region
    $region82: #{gnn_gru_forward.1} parent=1 // pred_check
      _
    $region83: #{gnn_gru_forward.1} parent=1 // pred_check_branch
      %141 = sbr.rel (0) target = $region85
    $region84: #{gnn_gru_forward.1} parent=1 // pred_region
      %142 = dma.done [#allocation14], 16
    $region85: #{gnn_gru_forward.1} parent=1 // pred_fallthru
      _
    %v143 = vld [vmem:[%s1] sm:$0xff]
    %v144 = vld [vmem:[%s1 + $0x8] sm:$0xff]
    %v145 = vld [vmem:[%s1 + $0x10] sm:$0xff]
    %v146 = vld [vmem:[%s1 + $0x18] sm:$0xff]
    %v147 = vld [vmem:[%s1 + $0x20] sm:$0xff]
    %v148 = vld [vmem:[%s1 + $0x28] sm:$0xff]
    %v149 = vld [vmem:[%s1 + $0x30] sm:$0xff]
    %v150 = vld [vmem:[%s1 + $0x38] sm:$0xff]
    %v151 = vld [vmem:[%s1 + $0x40] sm:$0xff]
    %v152 = vld [vmem:[%s1 + $0x48] sm:$0xff]
    %v153 = vld [vmem:[%s1 + $0x50] sm:$0xff]
    %v154 = vld [vmem:[%s1 + $0x58] sm:$0xff]
    %v155 = vld [vmem:[%s1 + $0x60] sm:$0xff]
    %v156 = vld [vmem:[%s1 + $0x68] sm:$0xff]
    %v157 = vld [vmem:[%s1 + $0x70] sm:$0xff]
    %v158 = vld [vmem:[%s1 + $0x78] sm:$0xff]
    %v159 = vld [vmem:[%s1 + $0x80] sm:$0xff]
    %v160 = vld [vmem:[%s1 + $0x88] sm:$0xff]
    %v161 = vld [vmem:[%s1 + $0x90] sm:$0xff]
    %v162 = vld [vmem:[%s1 + $0x98] sm:$0xff]
    %v163 = vld [vmem:[%s1 + $0xa0] sm:$0xff]
    %v164 = vld [vmem:[%s1 + $0xa8] sm:$0xff]
    %v165 = vld [vmem:[%s1 + $0xb0] sm:$0xff]
    %v166 = vld [vmem:[%s1 + $0xb8] sm:$0xff]
    %v167 = vld [vmem:[%s1 + $0xc0] sm:$0xff]
    %v168 = vld [vmem:[%s1 + $0xc8] sm:$0xff]
    %v169 = vld [vmem:[%s1 + $0xd0] sm:$0xff]
    %v170 = vld [vmem:[%s1 + $0xd8] sm:$0xff]
    %v171 = vld [vmem:[%s1 + $0xe0] sm:$0xff]
    %v172 = vld [vmem:[%s1 + $0xe8] sm:$0xff]
    %v173 = vld [vmem:[%s1 + $0xf0] sm:$0xff]
    %v174 = vld [vmem:[%s1 + $0xf8] sm:$0xff]
    %v175 = vld [vmem:[%s1 + $0x100] sm:$0xff]
    %v176 = vld [vmem:[%s1 + $0x108] sm:$0xff]
    %v177 = vld [vmem:[%s1 + $0x110] sm:$0xff]
    %v178 = vld [vmem:[%s1 + $0x118] sm:$0xff]
    %v179 = vld [vmem:[%s1 + $0x120] sm:$0xff]
    %v180 = vld [vmem:[%s1 + $0x128] sm:$0xff]
    %v181 = vld [vmem:[%s1 + $0x130] sm:$0xff]
    %v182 = vld [vmem:[%s1 + $0x138] sm:$0xff]
    %v183 = vld [vmem:[%s0] sm:$0xff]
    %v184 = vld [vmem:[%s0 + $0x8] sm:$0xff]
    %v185 = vld [vmem:[%s0 + $0x10] sm:$0xff]
    %v186 = vld [vmem:[%s0 + $0x18] sm:$0xff]
    %v187 = vld [vmem:[%s0 + $0x20] sm:$0xff]
    %v188 = vld [vmem:[%s0 + $0x28] sm:$0xff]
    %v189 = vld [vmem:[%s0 + $0x30] sm:$0xff]
    %v190 = vld [vmem:[%s0 + $0x38] sm:$0xff]
    %v191 = vld [vmem:[%s0 + $0x40] sm:$0xff]
    %v192 = vld [vmem:[%s0 + $0x48] sm:$0xff]
    %v193 = vld [vmem:[%s0 + $0x50] sm:$0xff]
    %v194 = vld [vmem:[%s0 + $0x58] sm:$0xff]
    %v195 = vld [vmem:[%s0 + $0x60] sm:$0xff]
    %v196 = vld [vmem:[%s0 + $0x68] sm:$0xff]
    %v197 = vld [vmem:[%s0 + $0x70] sm:$0xff]
    %v198 = vld [vmem:[%s0 + $0x78] sm:$0xff]
    %v199 = vld [vmem:[%s0 + $0x80] sm:$0xff]
    %v200 = vld [vmem:[%s0 + $0x88] sm:$0xff]
    %v201 = vld [vmem:[%s0 + $0x90] sm:$0xff]
    %v202 = vld [vmem:[%s0 + $0x98] sm:$0xff]
    %vm203 = vcmask 261120
    %v205 = vsel %vm203, %v144, 0
    %v208 = vsel %vm203, %v146, 0
    %v211 = vsel %vm203, %v148, 0
    %v214 = vsel %vm203, %v150, 0
    %v217 = vsel %vm203, %v152, 0
    %v220 = vsel %vm203, %v154, 0
    %v223 = vsel %vm203, %v156, 0
    %v226 = vsel %vm203, %v158, 0
    %v229 = vsel %vm203, %v160, 0
    %v232 = vsel %vm203, %v162, 0
    %v235 = vsel %vm203, %v164, 0
    %v238 = vsel %vm203, %v166, 0
    %v241 = vsel %vm203, %v168, 0
    %v244 = vsel %vm203, %v170, 0
    %v247 = vsel %vm203, %v172, 0
    %v250 = vsel %vm203, %v174, 0
    %v253 = vsel %vm203, %v176, 0
    %v256 = vsel %vm203, %v178, 0
    %v259 = vsel %vm203, %v180, 0
    %v262 = vsel %vm203, %v182, 0
    %264 = vmatprep.subr.mxu0 0.0
    %265 = vmatpush1.msra.mxu0 %v183
    %266 = vmatprep.subr.mxu0 0.0
    %267 = vmatpush1.msra.mxu0 %v184
    %268 = vmatprep.subr.mxu0 0.0
    %269 = vmatpush1.msra.mxu0 %v185
    %270 = vmatprep.subr.mxu0 0.0
    %271 = vmatpush1.msra.mxu0 %v186
    %272 = vmatprep.subr.mxu0 0.0
    %273 = vmatpush1.msra.mxu0 %v187
    %274 = vmatprep.subr.mxu0 0.0
    %275 = vmatpush1.msra.mxu0 %v188
    %276 = vmatprep.subr.mxu0 0.0
    %277 = vmatpush1.msra.mxu0 %v189
    %278 = vmatprep.subr.mxu0 0.0
    %279 = vmatpush1.msra.mxu0 %v190
    %280 = vmatprep.subr.mxu0 0.0
    %281 = vmatpush1.msra.mxu0 %v191
    %282 = vmatprep.subr.mxu0 0.0
    %283 = vmatpush1.msra.mxu0 %v192
    %284 = vmatprep.subr.mxu0 0.0
    %285 = vmatpush1.msra.mxu0 %v193
    %286 = vmatprep.subr.mxu0 0.0
    %287 = vmatpush1.msra.mxu0 %v194
    %288 = vmatprep.subr.mxu0 0.0
    %289 = vmatpush1.msra.mxu0 %v195
    %290 = vmatprep.subr.mxu0 0.0
    %291 = vmatpush1.msra.mxu0 %v196
    %292 = vmatprep.subr.mxu0 0.0
    %293 = vmatpush1.msra.mxu0 %v197
    %294 = vmatprep.subr.mxu0 0.0
    %295 = vmatpush1.msra.mxu0 %v198
    %296 = vmatprep.subr.mxu0 0.0
    %297 = vmatpush1.msra.mxu0 %v199
    %298 = vmatprep.subr.mxu0 0.0
    %299 = vmatpush1.msra.mxu0 %v200
    %300 = vmatprep.subr.mxu0 0.0
    %301 = vmatpush1.msra.mxu0 %v201
    %302 = vmatprep.subr.mxu0 0.0
    %303 = vmatpush1.msra.mxu0 %v202
    %304 = vmatprep.subr.mxu0 0.0
    %305 = vmatpush1.msra.mxu0 0.0
    %306 = vmatprep.subr.mxu0 0.0
    %307 = vmatpush1.msra.mxu0 0.0
    %308 = vmatprep.subr.mxu0 0.0
    %309 = vmatpush1.msra.mxu0 0.0
    %310 = vmatprep.subr.mxu0 0.0
    %311 = vmatpush1.msra.mxu0 0.0
    %312 = vmatprep.subr.mxu0 0.0
    %313 = vmatpush1.msra.mxu0 0.0
    %314 = vmatprep.subr.mxu0 0.0
    %315 = vmatpush1.msra.mxu0 0.0
    %316 = vmatprep.subr.mxu0 0.0
    %317 = vmatpush1.msra.mxu0 0.0
    %318 = vmatprep.subr.mxu0 0.0
    %319 = vmatpush1.msra.mxu0 0.0
    %320 = vmatprep.subr.mxu0 0.0
    %321 = vmatpush1.msra.mxu0 0.0
    %322 = vmatprep.subr.mxu0 0.0
    %323 = vmatpush1.msra.mxu0 0.0
    %324 = vmatprep.subr.mxu0 0.0
    %325 = vmatpush1.msra.mxu0 0.0
    %326 = vmatprep.subr.mxu0 0.0
    %327 = vmatpush1.msra.mxu0 0.0
    %328 = vmatprep.mubr.f32.mxu0 %v205
    %329 = vmatmul.mubr.f32.gmra.mrb[0].mxu0 %v143
    %v330 = vpop.f32.mrb[0].mxu0
    %v331 = vadd.f32 0.0, %v330
    %v332 = vpop.f32.mrb[0].mxu0
    %333 = vmatprep.mubr.f32.mxu0 %v208
    %334 = vmatmul.mubr.f32.gmra.mrb[0].mxu0 %v145
    %v335 = vpop.f32.mrb[0].mxu0
    %v336 = vadd.f32 0.0, %v335
    %v337 = vpop.f32.mrb[0].mxu0
    %338 = vmatprep.mubr.f32.mxu0 %v211
    %339 = vmatmul.mubr.f32.gmra.mrb[0].mxu0 %v147
    %v340 = vpop.f32.mrb[0].mxu0
    %v341 = vadd.f32 0.0, %v340
    %v342 = vpop.f32.mrb[0].mxu0
    %343 = vmatprep.mubr.f32.mxu0 %v214
    %344 = vmatmul.mubr.f32.gmra.mrb[0].mxu0 %v149
    %v345 = vpop.f32.mrb[0].mxu0
    %v346 = vadd.f32 0.0, %v345
    %v347 = vpop.f32.mrb[0].mxu0
    %348 = vmatprep.mubr.f32.mxu0 %v217
    %349 = vmatmul.mubr.f32.gmra.mrb[0].mxu0 %v151
    %v350 = vpop.f32.mrb[0].mxu0
    %v351 = vadd.f32 0.0, %v350
    %v352 = vpop.f32.mrb[0].mxu0
    %353 = vmatprep.mubr.f32.mxu0 %v220
    %354 = vmatmul.mubr.f32.gmra.mrb[0].mxu0 %v153
    %v355 = vpop.f32.mrb[0].mxu0
    %v356 = vadd.f32 0.0, %v355
    %v357 = vpop.f32.mrb[0].mxu0
    %358 = vmatprep.mubr.f32.mxu0 %v223
    %359 = vmatmul.mubr.f32.gmra.mrb[0].mxu0 %v155
    %v360 = vpop.f32.mrb[0].mxu0
    %v361 = vadd.f32 0.0, %v360
    %v362 = vpop.f32.mrb[0].mxu0
    %363 = vmatprep.mubr.f32.mxu0 %v226
    %364 = vmatmul.mubr.f32.gmra.mrb[0].mxu0 %v157
    %v365 = vpop.f32.mrb[0].mxu0
    %v366 = vadd.f32 0.0, %v365
    %v367 = vpop.f32.mrb[0].mxu0
    %368 = vmatprep.mubr.f32.mxu0 %v229
    %369 = vmatmul.mubr.f32.gmra.mrb[0].mxu0 %v159
    %v370 = vpop.f32.mrb[0].mxu0
    %v371 = vadd.f32 0.0, %v370
    %v372 = vpop.f32.mrb[0].mxu0
    %373 = vmatprep.mubr.f32.mxu0 %v232
    %374 = vmatmul.mubr.f32.gmra.mrb[0].mxu0 %v161
    %v375 = vpop.f32.mrb[0].mxu0
    %v376 = vadd.f32 0.0, %v375
    %v377 = vpop.f32.mrb[0].mxu0
    %378 = vmatprep.mubr.f32.mxu0 %v235
    %379 = vmatmul.mubr.f32.gmra.mrb[0].mxu0 %v163
    %v380 = vpop.f32.mrb[0].mxu0
    %v381 = vadd.f32 0.0, %v380
    %v382 = vpop.f32.mrb[0].mxu0
    %383 = vmatprep.mubr.f32.mxu0 %v238
    %384 = vmatmul.mubr.f32.gmra.mrb[0].mxu0 %v165
    %v385 = vpop.f32.mrb[0].mxu0
    %v386 = vadd.f32 0.0, %v385
    %v387 = vpop.f32.mrb[0].mxu0
    %388 = vmatprep.mubr.f32.mxu0 %v241
    %389 = vmatmul.mubr.f32.gmra.mrb[0].mxu0 %v167
    %v390 = vpop.f32.mrb[0].mxu0
    %v391 = vadd.f32 0.0, %v390
    %v392 = vpop.f32.mrb[0].mxu0
    %393 = vmatprep.mubr.f32.mxu0 %v244
    %394 = vmatmul.mubr.f32.gmra.mrb[0].mxu0 %v169
    %v395 = vpop.f32.mrb[0].mxu0
    %v396 = vadd.f32 0.0, %v395
    %v397 = vpop.f32.mrb[0].mxu0
    %398 = vmatprep.mubr.f32.mxu0 %v247
    %399 = vmatmul.mubr.f32.gmra.mrb[0].mxu0 %v171
    %v400 = vpop.f32.mrb[0].mxu0
    %v401 = vadd.f32 0.0, %v400
    %v402 = vpop.f32.mrb[0].mxu0
    %403 = vmatprep.mubr.f32.mxu0 %v250
    %404 = vmatmul.mubr.f32.gmra.mrb[0].mxu0 %v173
    %v405 = vpop.f32.mrb[0].mxu0
    %v406 = vadd.f32 0.0, %v405
    %v407 = vpop.f32.mrb[0].mxu0
    %408 = vmatprep.mubr.f32.mxu0 %v253
    %409 = vmatmul.mubr.f32.gmra.mrb[0].mxu0 %v175
    %v410 = vpop.f32.mrb[0].mxu0
    %v411 = vadd.f32 0.0, %v410
    %v412 = vpop.f32.mrb[0].mxu0
    %413 = vmatprep.mubr.f32.mxu0 %v256
    %414 = vmatmul.mubr.f32.gmra.mrb[0].mxu0 %v177
    %v415 = vpop.f32.mrb[0].mxu0
    %v416 = vadd.f32 0.0, %v415
    %v417 = vpop.f32.mrb[0].mxu0
    %418 = vmatprep.mubr.f32.mxu0 %v259
    %419 = vmatmul.mubr.f32.gmra.mrb[0].mxu0 %v179
    %v420 = vpop.f32.mrb[0].mxu0
    %v421 = vadd.f32 0.0, %v420
    %v422 = vpop.f32.mrb[0].mxu0
    %423 = vmatprep.mubr.f32.mxu0 %v262
    %424 = vmatmul.mubr.f32.gmra.mrb[0].mxu0 %v181
    %v425 = vpop.f32.mrb[0].mxu0
    %v426 = vadd.f32 0.0, %v425
    %v427 = vpop.f32.mrb[0].mxu0
    %428 = vdwg.mxu0
    %v429 = vld [vmem:[#allocation4] sm:$0x3f]
    %v430 = vld [vmem:[%s4] sm:$0x1]
    %v432 = vlaneseq
    %v433 = vshrl.u32 %v432, 7
    %v434 = vsub.s32 0, %v433
    %v435 = vrot.slane %v430, %v434
    %vm437 = vcmask 48128
    %v439 = vsel %vm437, %v331, 0
    %v442 = vsel %vm437, %v336, 0
    %v445 = vsel %vm437, %v341, 0
    %v448 = vsel %vm437, %v346, 0
    %v451 = vsel %vm437, %v351, 0
    %v454 = vsel %vm437, %v356, 0
    %v457 = vsel %vm437, %v361, 0
    %v460 = vsel %vm437, %v366, 0
    %v463 = vsel %vm437, %v371, 0
    %v466 = vsel %vm437, %v376, 0
    %v469 = vsel %vm437, %v381, 0
    %v472 = vsel %vm437, %v386, 0
    %v475 = vsel %vm437, %v391, 0
    %v478 = vsel %vm437, %v396, 0
    %v481 = vsel %vm437, %v401, 0
    %v484 = vsel %vm437, %v406, 0
    %v487 = vsel %vm437, %v411, 0
    %v490 = vsel %vm437, %v416, 0
    %v493 = vsel %vm437, %v421, 0
    %v496 = vsel %vm437, %v426, 0
    %vm498 = vcmask 1045504
    %v500 = vsel %vm498, %v429, 0
    %502 = vmatprep.subr.mxu0 0.0
    %503 = vmatpush1.msra.mxu0 %v500
    %504 = vmatprep.subr.mxu0 0.0
    %505 = vmatpush1.msra.mxu0 0.0
    %506 = vmatprep.subr.mxu0 0.0
    %507 = vmatpush1.msra.mxu0 0.0
    %508 = vmatprep.subr.mxu0 0.0
    %509 = vmatpush1.msra.mxu0 0.0
    %510 = vmatprep.subr.mxu0 0.0
    %511 = vmatpush1.msra.mxu0 0.0
    %512 = vmatprep.subr.mxu0 0.0
    %513 = vmatpush1.msra.mxu0 0.0
    %514 = vmatprep.subr.mxu0 0.0
    %515 = vmatpush1.msra.mxu0 0.0
    %516 = vmatprep.subr.mxu0 0.0
    %517 = vmatpush1.msra.mxu0 0.0
    %518 = vmatprep.subr.mxu0 0.0
    %519 = vmatpush1.msra.mxu0 0.0
    %520 = vmatprep.subr.mxu0 0.0
    %521 = vmatpush1.msra.mxu0 0.0
    %522 = vmatprep.subr.mxu0 0.0
    %523 = vmatpush1.msra.mxu0 0.0
    %524 = vmatprep.subr.mxu0 0.0
    %525 = vmatpush1.msra.mxu0 0.0
    %526 = vmatprep.subr.mxu0 0.0
    %527 = vmatpush1.msra.mxu0 0.0
    %528 = vmatprep.subr.mxu0 0.0
    %529 = vmatpush1.msra.mxu0 0.0
    %530 = vmatprep.subr.mxu0 0.0
    %531 = vmatpush1.msra.mxu0 0.0
    %532 = vmatprep.subr.mxu0 0.0
    %533 = vmatpush1.msra.mxu0 0.0
    %534 = vmatprep.subr.mxu0 0.0
    %535 = vmatpush1.msra.mxu0 0.0
    %536 = vmatprep.subr.mxu0 0.0
    %537 = vmatpush1.msra.mxu0 0.0
    %538 = vmatprep.subr.mxu0 0.0
    %539 = vmatpush1.msra.mxu0 0.0
    %540 = vmatprep.subr.mxu0 0.0
    %541 = vmatpush1.msra.mxu0 0.0
    %542 = vmatprep.subr.mxu0 0.0
    %543 = vmatpush1.msra.mxu0 0.0
    %544 = vmatprep.subr.mxu0 0.0
    %545 = vmatpush1.msra.mxu0 0.0
    %546 = vmatprep.subr.mxu0 0.0
    %547 = vmatpush1.msra.mxu0 0.0
    %548 = vmatprep.subr.mxu0 0.0
    %549 = vmatpush1.msra.mxu0 0.0
    %550 = vmatprep.subr.mxu0 0.0
    %551 = vmatpush1.msra.mxu0 0.0
    %552 = vmatprep.subr.mxu0 0.0
    %553 = vmatpush1.msra.mxu0 0.0
    %554 = vmatprep.subr.mxu0 0.0
    %555 = vmatpush1.msra.mxu0 0.0
    %556 = vmatprep.subr.mxu0 0.0
    %557 = vmatpush1.msra.mxu0 0.0
    %558 = vmatprep.subr.mxu0 0.0
    %559 = vmatpush1.msra.mxu0 0.0
    %560 = vmatprep.subr.mxu0 0.0
    %561 = vmatpush1.msra.mxu0 0.0
    %562 = vmatprep.subr.mxu0 0.0
    %563 = vmatpush1.msra.mxu0 0.0
    %564 = vmatprep.subr.mxu0 0.0
    %565 = vmatpush1.msra.mxu0 0.0
    %566 = vmatprep.mubr.f32.mxu0 0.0
    %567 = vmatmul.mubr.f32.gmra.mrb[0].mxu0 %v439
    %v568 = vpop.f32.mrb[0].mxu0
    %v569 = vadd.f32 %v435, %v568
    %v570 = vpop.f32.mrb[0].mxu0
    %571 = vmatprep.mubr.f32.mxu0 0.0
    %572 = vmatmul.mubr.f32.gmra.mrb[0].mxu0 %v442
    %v573 = vpop.f32.mrb[0].mxu0
    %v574 = vadd.f32 %v435, %v573
    %v575 = vpop.f32.mrb[0].mxu0
    %576 = vmatprep.mubr.f32.mxu0 0.0
    %577 = vmatmul.mubr.f32.gmra.mrb[0].mxu0 %v445
    %v578 = vpop.f32.mrb[0].mxu0
    %v579 = vadd.f32 %v435, %v578
    %v580 = vpop.f32.mrb[0].mxu0
    %581 = vmatprep.mubr.f32.mxu0 0.0
    %582 = vmatmul.mubr.f32.gmra.mrb[0].mxu0 %v448
    %v583 = vpop.f32.mrb[0].mxu0
    %v584 = vadd.f32 %v435, %v583
    %v585 = vpop.f32.mrb[0].mxu0
    %586 = vmatprep.mubr.f32.mxu0 0.0
    %587 = vmatmul.mubr.f32.gmra.mrb[0].mxu0 %v451
    %v588 = vpop.f32.mrb[0].mxu0
    %v589 = vadd.f32 %v435, %v588
    %v590 = vpop.f32.mrb[0].mxu0
    %591 = vmatprep.mubr.f32.mxu0 0.0
    %592 = vmatmul.mubr.f32.gmra.mrb[0].mxu0 %v454
    %v593 = vpop.f32.mrb[0].mxu0
    %v594 = vadd.f32 %v435, %v593
    %v595 = vpop.f32.mrb[0].mxu0
    %596 = vmatprep.mubr.f32.mxu0 0.0
    %597 = vmatmul.mubr.f32.gmra.mrb[0].mxu0 %v457
    %v598 = vpop.f32.mrb[0].mxu0
    %v599 = vadd.f32 %v435, %v598
    %v600 = vpop.f32.mrb[0].mxu0
    %601 = vmatprep.mubr.f32.mxu0 0.0
    %602 = vmatmul.mubr.f32.gmra.mrb[0].mxu0 %v460
    %v603 = vpop.f32.mrb[0].mxu0
    %v604 = vadd.f32 %v435, %v603
    %v605 = vpop.f32.mrb[0].mxu0
    %606 = vmatprep.mubr.f32.mxu0 0.0
    %607 = vmatmul.mubr.f32.gmra.mrb[0].mxu0 %v463
    %v608 = vpop.f32.mrb[0].mxu0
    %v609 = vadd.f32 %v435, %v608
    %v610 = vpop.f32.mrb[0].mxu0
    %611 = vmatprep.mubr.f32.mxu0 0.0
    %612 = vmatmul.mubr.f32.gmra.mrb[0].mxu0 %v466
    %v613 = vpop.f32.mrb[0].mxu0
    %v614 = vadd.f32 %v435, %v613
    %v615 = vpop.f32.mrb[0].mxu0
    %616 = vmatprep.mubr.f32.mxu0 0.0
    %617 = vmatmul.mubr.f32.gmra.mrb[0].mxu0 %v469
    %v618 = vpop.f32.mrb[0].mxu0
    %v619 = vadd.f32 %v435, %v618
    %v620 = vpop.f32.mrb[0].mxu0
    %621 = vmatprep.mubr.f32.mxu0 0.0
    %622 = vmatmul.mubr.f32.gmra.mrb[0].mxu0 %v472
    %v623 = vpop.f32.mrb[0].mxu0
    %v624 = vadd.f32 %v435, %v623
    %v625 = vpop.f32.mrb[0].mxu0
    %626 = vmatprep.mubr.f32.mxu0 0.0
    %627 = vmatmul.mubr.f32.gmra.mrb[0].mxu0 %v475
    %v628 = vpop.f32.mrb[0].mxu0
    %v629 = vadd.f32 %v435, %v628
    %v630 = vpop.f32.mrb[0].mxu0
    %631 = vmatprep.mubr.f32.mxu0 0.0
    %632 = vmatmul.mubr.f32.gmra.mrb[0].mxu0 %v478
    %v633 = vpop.f32.mrb[0].mxu0
    %v634 = vadd.f32 %v435, %v633
    %v635 = vpop.f32.mrb[0].mxu0
    %636 = vmatprep.mubr.f32.mxu0 0.0
    %637 = vmatmul.mubr.f32.gmra.mrb[0].mxu0 %v481
    %v638 = vpop.f32.mrb[0].mxu0
    %v639 = vadd.f32 %v435, %v638
    %v640 = vpop.f32.mrb[0].mxu0
    %641 = vmatprep.mubr.f32.mxu0 0.0
    %642 = vmatmul.mubr.f32.gmra.mrb[0].mxu0 %v484
    %v643 = vpop.f32.mrb[0].mxu0
    %v644 = vadd.f32 %v435, %v643
    %v645 = vpop.f32.mrb[0].mxu0
    %646 = vmatprep.mubr.f32.mxu0 0.0
    %647 = vmatmul.mubr.f32.gmra.mrb[0].mxu0 %v487
    %v648 = vpop.f32.mrb[0].mxu0
    %v649 = vadd.f32 %v435, %v648
    %v650 = vpop.f32.mrb[0].mxu0
    %651 = vmatprep.mubr.f32.mxu0 0.0
    %652 = vmatmul.mubr.f32.gmra.mrb[0].mxu0 %v490
    %v653 = vpop.f32.mrb[0].mxu0
    %v654 = vadd.f32 %v435, %v653
    %v655 = vpop.f32.mrb[0].mxu0
    %656 = vmatprep.mubr.f32.mxu0 0.0
    %657 = vmatmul.mubr.f32.gmra.mrb[0].mxu0 %v493
    %v658 = vpop.f32.mrb[0].mxu0
    %v659 = vadd.f32 %v435, %v658
    %v660 = vpop.f32.mrb[0].mxu0
    %661 = vmatprep.mubr.f32.mxu0 0.0
    %662 = vmatmul.mubr.f32.gmra.mrb[0].mxu0 %v496
    %v663 = vpop.f32.mrb[0].mxu0
    %v664 = vadd.f32 %v435, %v663
    %v665 = vpop.f32.mrb[0].mxu0
    %666 = vdwg.mxu0
    %v667 = vmax.f32 %v569, 0.0
    %v668 = vmax.f32 %v574, 0.0
    %v669 = vmax.f32 %v579, 0.0
    %v670 = vmax.f32 %v584, 0.0
    %v671 = vmax.f32 %v589, 0.0
    %v672 = vmax.f32 %v594, 0.0
    %v673 = vmax.f32 %v599, 0.0
    %v674 = vmax.f32 %v604, 0.0
    %v675 = vmax.f32 %v609, 0.0
    %v676 = vmax.f32 %v614, 0.0
    %v677 = vmax.f32 %v619, 0.0
    %v678 = vmax.f32 %v624, 0.0
    %v679 = vmax.f32 %v629, 0.0
    %v680 = vmax.f32 %v634, 0.0
    %v681 = vmax.f32 %v639, 0.0
    %v682 = vmax.f32 %v644, 0.0
    %v683 = vmax.f32 %v649, 0.0
    %v684 = vmax.f32 %v654, 0.0
    %v685 = vmax.f32 %v659, 0.0
    %v686 = vmax.f32 %v664, 0.0
    %v687 = vld [vmem:[#allocation2] sm:$0xff]
    %v688 = vld [vmem:[#allocation2 + $0x8] sm:$0xff]
    %v689 = vld [vmem:[#allocation2 + $0x10] sm:$0xff]
    %v690 = vld [vmem:[#allocation2 + $0x18] sm:$0xff]
    %v691 = vld [vmem:[#allocation2 + $0x20] sm:$0xff]
    %v692 = vld [vmem:[#allocation2 + $0x28] sm:$0xff]
    %v693 = vld [vmem:[#allocation2 + $0x30] sm:$0xff]
    %v694 = vld [vmem:[#allocation2 + $0x38] sm:$0xff]
    %v695 = vld [vmem:[#allocation2 + $0x40] sm:$0xff]
    %v696 = vld [vmem:[#allocation2 + $0x48] sm:$0xff]
    %v697 = vld [vmem:[#allocation2 + $0x50] sm:$0xff]
    %v698 = vld [vmem:[#allocation2 + $0x58] sm:$0xff]
    %v699 = vld [vmem:[#allocation2 + $0x60] sm:$0xff]
    %v700 = vld [vmem:[#allocation2 + $0x68] sm:$0xff]
    %v701 = vld [vmem:[#allocation2 + $0x70] sm:$0xf]
    %v702 = vld [vmem:[#allocation2 + $0x78] sm:$0xf]
    %v704 = vsel %vm203, %v688, 0
    %v707 = vsel %vm203, %v690, 0
    %v710 = vsel %vm203, %v692, 0
    %v713 = vsel %vm203, %v694, 0
    %v716 = vsel %vm203, %v696, 0
    %v719 = vsel %vm203, %v698, 0
    %v722 = vsel %vm203, %v700, 0
    %v725 = vsel %vm203, %v702, 0
    %727 = vmatprep.subr.mxu0 0.0
    %728 = vmatpush1.msra.mxu0 %v667
    %729 = vmatprep.subr.mxu0 0.0
    %730 = vmatpush1.msra.mxu0 %v668
    %731 = vmatprep.subr.mxu0 0.0
    %732 = vmatpush1.msra.mxu0 %v669
    %733 = vmatprep.subr.mxu0 0.0
    %734 = vmatpush1.msra.mxu0 %v670
    %735 = vmatprep.subr.mxu0 0.0
    %736 = vmatpush1.msra.mxu0 %v671
    %737 = vmatprep.subr.mxu0 0.0
    %738 = vmatpush1.msra.mxu0 %v672
    %739 = vmatprep.subr.mxu0 0.0
    %740 = vmatpush1.msra.mxu0 %v673
    %741 = vmatprep.subr.mxu0 0.0
    %742 = vmatpush1.msra.mxu0 %v674
    %743 = vmatprep.subr.mxu0 0.0
    %744 = vmatpush1.msra.mxu0 %v675
    %745 = vmatprep.subr.mxu0 0.0
    %746 = vmatpush1.msra.mxu0 %v676
    %747 = vmatprep.subr.mxu0 0.0
    %748 = vmatpush1.msra.mxu0 %v677
    %749 = vmatprep.subr.mxu0 0.0
    %750 = vmatpush1.msra.mxu0 %v678
    %751 = vmatprep.subr.mxu0 0.0
    %752 = vmatpush1.msra.mxu0 %v679
    %753 = vmatprep.subr.mxu0 0.0
    %754 = vmatpush1.msra.mxu0 %v680
    %755 = vmatprep.subr.mxu0 0.0
    %756 = vmatpush1.msra.mxu0 %v681
    %757 = vmatprep.subr.mxu0 0.0
    %758 = vmatpush1.msra.mxu0 %v682
    %759 = vmatprep.subr.mxu0 0.0
    %760 = vmatpush1.msra.mxu0 %v683
    %761 = vmatprep.subr.mxu0 0.0
    %762 = vmatpush1.msra.mxu0 %v684
    %763 = vmatprep.subr.mxu0 0.0
    %764 = vmatpush1.msra.mxu0 %v685
    %765 = vmatprep.subr.mxu0 0.0
    %766 = vmatpush1.msra.mxu0 %v686
    %767 = vmatprep.subr.mxu0 0.0
    %768 = vmatpush1.msra.mxu0 0.0
    %769 = vmatprep.subr.mxu0 0.0
    %770 = vmatpush1.msra.mxu0 0.0
    %771 = vmatprep.subr.mxu0 0.0
    %772 = vmatpush1.msra.mxu0 0.0
    %773 = vmatprep.subr.mxu0 0.0
    %774 = vmatpush1.msra.mxu0 0.0
    %775 = vmatprep.subr.mxu0 0.0
    %776 = vmatpush1.msra.mxu0 0.0
    %777 = vmatprep.subr.mxu0 0.0
    %778 = vmatpush1.msra.mxu0 0.0
    %779 = vmatprep.subr.mxu0 0.0
    %780 = vmatpush1.msra.mxu0 0.0
    %781 = vmatprep.subr.mxu0 0.0
    %782 = vmatpush1.msra.mxu0 0.0
    %783 = vmatprep.subr.mxu0 0.0
    %784 = vmatpush1.msra.mxu0 0.0
    %785 = vmatprep.subr.mxu0 0.0
    %786 = vmatpush1.msra.mxu0 0.0
    %787 = vmatprep.subr.mxu0 0.0
    %788 = vmatpush1.msra.mxu0 0.0
    %789 = vmatprep.subr.mxu0 0.0
    %790 = vmatpush1.msra.mxu0 0.0
    %791 = vmatprep.mubr.f32.mxu0 %v704
    %792 = vmatmul.mubr.f32.gmra.mrb[0].mxu0 %v687
    %v793 = vpop.f32.mrb[0].mxu0
    %v794 = vadd.f32 0.0, %v793
    %v795 = vpop.f32.mrb[0].mxu0
    %796 = vmatprep.mubr.f32.mxu0 %v707
    %797 = vmatmul.mubr.f32.gmra.mrb[0].mxu0 %v689
    %v798 = vpop.f32.mrb[0].mxu0
    %v799 = vadd.f32 0.0, %v798
    %v800 = vpop.f32.mrb[0].mxu0
    %801 = vmatprep.mubr.f32.mxu0 %v710
    %802 = vmatmul.mubr.f32.gmra.mrb[0].mxu0 %v691
    %v803 = vpop.f32.mrb[0].mxu0
    %v804 = vadd.f32 0.0, %v803
    %v805 = vpop.f32.mrb[0].mxu0
    %806 = vmatprep.mubr.f32.mxu0 %v713
    %807 = vmatmul.mubr.f32.gmra.mrb[0].mxu0 %v693
    %v808 = vpop.f32.mrb[0].mxu0
    %v809 = vadd.f32 0.0, %v808
    %v810 = vpop.f32.mrb[0].mxu0
    %811 = vmatprep.mubr.f32.mxu0 %v716
    %812 = vmatmul.mubr.f32.gmra.mrb[0].mxu0 %v695
    %v813 = vpop.f32.mrb[0].mxu0
    %v814 = vadd.f32 0.0, %v813
    %v815 = vpop.f32.mrb[0].mxu0
    %816 = vmatprep.mubr.f32.mxu0 %v719
    %817 = vmatmul.mubr.f32.gmra.mrb[0].mxu0 %v697
    %v818 = vpop.f32.mrb[0].mxu0
    %v819 = vadd.f32 0.0, %v818
    %v820 = vpop.f32.mrb[0].mxu0
    %821 = vmatprep.mubr.f32.mxu0 %v722
    %822 = vmatmul.mubr.f32.gmra.mrb[0].mxu0 %v699
    %v823 = vpop.f32.mrb[0].mxu0
    %v824 = vadd.f32 0.0, %v823
    %v825 = vpop.f32.mrb[0].mxu0
    %826 = vmatprep.mubr.f32.mxu0 %v725
    %827 = vmatmul.mubr.f32.gmra.mrb[0].mxu0 %v701
    %v828 = vpop.f32.mrb[0].mxu0
    %v829 = vadd.f32 0.0, %v828
    %v830 = vpop.f32.mrb[0].mxu0
    %831 = vdwg.mxu0
    %v832 = vld [vmem:[#allocation6] sm:$0xff]
    %v833 = vld [vmem:[#allocation6 + $0x8] sm:$0xff]
    %v834 = vld [vmem:[#allocation6 + $0x10] sm:$0xff]
    %v835 = vld [vmem:[#allocation6 + $0x18] sm:$0xff]
    %v836 = vld [vmem:[#allocation7] sm:$0x1]
    %v838 = vlaneseq
    %v839 = vshrl.u32 %v838, 7
    %v840 = vsub.s32 0, %v839
    %v841 = vrot.slane %v836, %v840
    %v844 = vsel %vm203, %v794, 0
    %v847 = vsel %vm203, %v799, 0
    %v850 = vsel %vm203, %v804, 0
    %v853 = vsel %vm203, %v809, 0
    %v856 = vsel %vm203, %v814, 0
    %v859 = vsel %vm203, %v819, 0
    %v862 = vsel %vm203, %v824, 0
    %v865 = vsel %vm203, %v829, 0
    %867 = vmatprep.subr.mxu0 0.0
    %868 = vmatpush1.msra.mxu0 %v832
    %869 = vmatprep.subr.mxu0 0.0
    %870 = vmatpush1.msra.mxu0 %v833
    %871 = vmatprep.subr.mxu0 0.0
    %872 = vmatpush1.msra.mxu0 %v834
    %873 = vmatprep.subr.mxu0 0.0
    %874 = vmatpush1.msra.mxu0 %v835
    %875 = vmatprep.subr.mxu0 0.0
    %876 = vmatpush1.msra.mxu0 0.0
    %877 = vmatprep.subr.mxu0 0.0
    %878 = vmatpush1.msra.mxu0 0.0
    %879 = vmatprep.subr.mxu0 0.0
    %880 = vmatpush1.msra.mxu0 0.0
    %881 = vmatprep.subr.mxu0 0.0
    %882 = vmatpush1.msra.mxu0 0.0
    %883 = vmatprep.subr.mxu0 0.0
    %884 = vmatpush1.msra.mxu0 0.0
    %885 = vmatprep.subr.mxu0 0.0
    %886 = vmatpush1.msra.mxu0 0.0
    %887 = vmatprep.subr.mxu0 0.0
    %888 = vmatpush1.msra.mxu0 0.0
    %889 = vmatprep.subr.mxu0 0.0
    %890 = vmatpush1.msra.mxu0 0.0
    %891 = vmatprep.subr.mxu0 0.0
    %892 = vmatpush1.msra.mxu0 0.0
    %893 = vmatprep.subr.mxu0 0.0
    %894 = vmatpush1.msra.mxu0 0.0
    %895 = vmatprep.subr.mxu0 0.0
    %896 = vmatpush1.msra.mxu0 0.0
    %897 = vmatprep.subr.mxu0 0.0
    %898 = vmatpush1.msra.mxu0 0.0
    %899 = vmatprep.subr.mxu0 0.0
    %900 = vmatpush1.msra.mxu0 0.0
    %901 = vmatprep.subr.mxu0 0.0
    %902 = vmatpush1.msra.mxu0 0.0
    %903 = vmatprep.subr.mxu0 0.0
    %904 = vmatpush1.msra.mxu0 0.0
    %905 = vmatprep.subr.mxu0 0.0
    %906 = vmatpush1.msra.mxu0 0.0
    %907 = vmatprep.subr.mxu0 0.0
    %908 = vmatpush1.msra.mxu0 0.0
    %909 = vmatprep.subr.mxu0 0.0
    %910 = vmatpush1.msra.mxu0 0.0
    %911 = vmatprep.subr.mxu0 0.0
    %912 = vmatpush1.msra.mxu0 0.0
    %913 = vmatprep.subr.mxu0 0.0
    %914 = vmatpush1.msra.mxu0 0.0
    %915 = vmatprep.subr.mxu0 0.0
    %916 = vmatpush1.msra.mxu0 0.0
    %917 = vmatprep.subr.mxu0 0.0
    %918 = vmatpush1.msra.mxu0 0.0
    %919 = vmatprep.subr.mxu0 0.0
    %920 = vmatpush1.msra.mxu0 0.0
    %921 = vmatprep.subr.mxu0 0.0
    %922 = vmatpush1.msra.mxu0 0.0
    %923 = vmatprep.subr.mxu0 0.0
    %924 = vmatpush1.msra.mxu0 0.0
    %925 = vmatprep.subr.mxu0 0.0
    %926 = vmatpush1.msra.mxu0 0.0
    %927 = vmatprep.subr.mxu0 0.0
    %928 = vmatpush1.msra.mxu0 0.0
    %929 = vmatprep.subr.mxu0 0.0
    %930 = vmatpush1.msra.mxu0 0.0
    %931 = vmatprep.mubr.f32.mxu0 0.0
    %932 = vmatmul.mubr.f32.gmra.mrb[0].mxu0 %v844
    %v933 = vpop.f32.mrb[0].mxu0
    %v934 = vadd.f32 %v841, %v933
    %v935 = vpop.f32.mrb[0].mxu0
    %936 = vmatprep.mubr.f32.mxu0 0.0
    %937 = vmatmul.mubr.f32.gmra.mrb[0].mxu0 %v847
    %v938 = vpop.f32.mrb[0].mxu0
    %v939 = vadd.f32 %v841, %v938
    %v940 = vpop.f32.mrb[0].mxu0
    %941 = vmatprep.mubr.f32.mxu0 0.0
    %942 = vmatmul.mubr.f32.gmra.mrb[0].mxu0 %v850
    %v943 = vpop.f32.mrb[0].mxu0
    %v944 = vadd.f32 %v841, %v943
    %v945 = vpop.f32.mrb[0].mxu0
    %946 = vmatprep.mubr.f32.mxu0 0.0
    %947 = vmatmul.mubr.f32.gmra.mrb[0].mxu0 %v853
    %v948 = vpop.f32.mrb[0].mxu0
    %v949 = vadd.f32 %v841, %v948
    %v950 = vpop.f32.mrb[0].mxu0
    %951 = vmatprep.mubr.f32.mxu0 0.0
    %952 = vmatmul.mubr.f32.gmra.mrb[0].mxu0 %v856
    %v953 = vpop.f32.mrb[0].mxu0
    %v954 = vadd.f32 %v841, %v953
    %v955 = vpop.f32.mrb[0].mxu0
    %956 = vmatprep.mubr.f32.mxu0 0.0
    %957 = vmatmul.mubr.f32.gmra.mrb[0].mxu0 %v859
    %v958 = vpop.f32.mrb[0].mxu0
    %v959 = vadd.f32 %v841, %v958
    %v960 = vpop.f32.mrb[0].mxu0
    %961 = vmatprep.mubr.f32.mxu0 0.0
    %962 = vmatmul.mubr.f32.gmra.mrb[0].mxu0 %v862
    %v963 = vpop.f32.mrb[0].mxu0
    %v964 = vadd.f32 %v841, %v963
    %v965 = vpop.f32.mrb[0].mxu0
    %966 = vmatprep.mubr.f32.mxu0 0.0
    %967 = vmatmul.mubr.f32.gmra.mrb[0].mxu0 %v865
    %v968 = vpop.f32.mrb[0].mxu0
    %v969 = vadd.f32 %v841, %v968
    %v970 = vpop.f32.mrb[0].mxu0
    %971 = vdwg.mxu0
    %v972 = vmax.f32 %v934, 0.0
    %v973 = vmax.f32 %v939, 0.0
    %v974 = vmax.f32 %v944, 0.0
    %v975 = vmax.f32 %v949, 0.0
    %v976 = vmax.f32 %v954, 0.0
    %v977 = vmax.f32 %v959, 0.0
    %v978 = vmax.f32 %v964, 0.0
    %v979 = vmax.f32 %v969, 0.0
    %v980 = vld [vmem:[%s7] sm:$0xff]
    %v981 = vld [vmem:[%s7 + $0x8] sm:$0xff]
    %v982 = vld [vmem:[%s7 + $0x10] sm:$0xff]
    %v983 = vld [vmem:[%s7 + $0x18] sm:$0xff]
    %v984 = vld [vmem:[#allocation10] sm:$0x1]
    %v986 = vlaneseq
    %v987 = vshrl.u32 %v986, 7
    %v988 = vsub.s32 0, %v987
    %v989 = vrot.slane %v984, %v988
    %v992 = vsel %vm203, %v972, 0
    %v995 = vsel %vm203, %v973, 0
    %v998 = vsel %vm203, %v974, 0
    %v1001 = vsel %vm203, %v975, 0
    %v1004 = vsel %vm203, %v976, 0
    %v1007 = vsel %vm203, %v977, 0
    %v1010 = vsel %vm203, %v978, 0
    %v1013 = vsel %vm203, %v979, 0
    %1015 = vmatprep.subr.mxu0 0.0
    %1016 = vmatpush1.msra.mxu0 %v980
    %1017 = vmatprep.subr.mxu0 0.0
    %1018 = vmatpush1.msra.mxu0 %v981
    %1019 = vmatprep.subr.mxu0 0.0
    %1020 = vmatpush1.msra.mxu0 %v982
    %1021 = vmatprep.subr.mxu0 0.0
    %1022 = vmatpush1.msra.mxu0 %v983
    %1023 = vmatprep.subr.mxu0 0.0
    %1024 = vmatpush1.msra.mxu0 0.0
    %1025 = vmatprep.subr.mxu0 0.0
    %1026 = vmatpush1.msra.mxu0 0.0
    %1027 = vmatprep.subr.mxu0 0.0
    %1028 = vmatpush1.msra.mxu0 0.0
    %1029 = vmatprep.subr.mxu0 0.0
    %1030 = vmatpush1.msra.mxu0 0.0
    %1031 = vmatprep.subr.mxu0 0.0
    %1032 = vmatpush1.msra.mxu0 0.0
    %1033 = vmatprep.subr.mxu0 0.0
    %1034 = vmatpush1.msra.mxu0 0.0
    %1035 = vmatprep.subr.mxu0 0.0
    %1036 = vmatpush1.msra.mxu0 0.0
    %1037 = vmatprep.subr.mxu0 0.0
    %1038 = vmatpush1.msra.mxu0 0.0
    %1039 = vmatprep.subr.mxu0 0.0
    %1040 = vmatpush1.msra.mxu0 0.0
    %1041 = vmatprep.subr.mxu0 0.0
    %1042 = vmatpush1.msra.mxu0 0.0
    %1043 = vmatprep.subr.mxu0 0.0
    %1044 = vmatpush1.msra.mxu0 0.0
    %1045 = vmatprep.subr.mxu0 0.0
    %1046 = vmatpush1.msra.mxu0 0.0
    %1047 = vmatprep.subr.mxu0 0.0
    %1048 = vmatpush1.msra.mxu0 0.0
    %1049 = vmatprep.subr.mxu0 0.0
    %1050 = vmatpush1.msra.mxu0 0.0
    %1051 = vmatprep.subr.mxu0 0.0
    %1052 = vmatpush1.msra.mxu0 0.0
    %1053 = vmatprep.subr.mxu0 0.0
    %1054 = vmatpush1.msra.mxu0 0.0
    %1055 = vmatprep.subr.mxu0 0.0
    %1056 = vmatpush1.msra.mxu0 0.0
    %1057 = vmatprep.subr.mxu0 0.0
    %1058 = vmatpush1.msra.mxu0 0.0
    %1059 = vmatprep.subr.mxu0 0.0
    %1060 = vmatpush1.msra.mxu0 0.0
    %1061 = vmatprep.subr.mxu0 0.0
    %1062 = vmatpush1.msra.mxu0 0.0
    %1063 = vmatprep.subr.mxu0 0.0
    %1064 = vmatpush1.msra.mxu0 0.0
    %1065 = vmatprep.subr.mxu0 0.0
    %1066 = vmatpush1.msra.mxu0 0.0
    %1067 = vmatprep.subr.mxu0 0.0
    %1068 = vmatpush1.msra.mxu0 0.0
    %1069 = vmatprep.subr.mxu0 0.0
    %1070 = vmatpush1.msra.mxu0 0.0
    %1071 = vmatprep.subr.mxu0 0.0
    %1072 = vmatpush1.msra.mxu0 0.0
    %1073 = vmatprep.subr.mxu0 0.0
    %1074 = vmatpush1.msra.mxu0 0.0
    %1075 = vmatprep.subr.mxu0 0.0
    %1076 = vmatpush1.msra.mxu0 0.0
    %1077 = vmatprep.subr.mxu0 0.0
    %1078 = vmatpush1.msra.mxu0 0.0
    %1079 = vmatprep.mubr.f32.mxu0 0.0
    %1080 = vmatmul.mubr.f32.gmra.mrb[0].mxu0 %v992
    %v1081 = vpop.f32.mrb[0].mxu0
    %v1082 = vadd.f32 %v989, %v1081
    %v1083 = vpop.f32.mrb[0].mxu0
    %1084 = vmatprep.mubr.f32.mxu0 0.0
    %1085 = vmatmul.mubr.f32.gmra.mrb[0].mxu0 %v995
    %v1086 = vpop.f32.mrb[0].mxu0
    %v1087 = vadd.f32 %v989, %v1086
    %v1088 = vpop.f32.mrb[0].mxu0
    %1089 = vmatprep.mubr.f32.mxu0 0.0
    %1090 = vmatmul.mubr.f32.gmra.mrb[0].mxu0 %v998
    %v1091 = vpop.f32.mrb[0].mxu0
    %v1092 = vadd.f32 %v989, %v1091
    %v1093 = vpop.f32.mrb[0].mxu0
    %1094 = vmatprep.mubr.f32.mxu0 0.0
    %1095 = vmatmul.mubr.f32.gmra.mrb[0].mxu0 %v1001
    %v1096 = vpop.f32.mrb[0].mxu0
    %v1097 = vadd.f32 %v989, %v1096
    %v1098 = vpop.f32.mrb[0].mxu0
    %1099 = vmatprep.mubr.f32.mxu0 0.0
    %1100 = vmatmul.mubr.f32.gmra.mrb[0].mxu0 %v1004
    %v1101 = vpop.f32.mrb[0].mxu0
    %v1102 = vadd.f32 %v989, %v1101
    %v1103 = vpop.f32.mrb[0].mxu0
    %1104 = vmatprep.mubr.f32.mxu0 0.0
    %1105 = vmatmul.mubr.f32.gmra.mrb[0].mxu0 %v1007
    %v1106 = vpop.f32.mrb[0].mxu0
    %v1107 = vadd.f32 %v989, %v1106
    %v1108 = vpop.f32.mrb[0].mxu0
    %1109 = vmatprep.mubr.f32.mxu0 0.0
    %1110 = vmatmul.mubr.f32.gmra.mrb[0].mxu0 %v1010
    %v1111 = vpop.f32.mrb[0].mxu0
    %v1112 = vadd.f32 %v989, %v1111
    %v1113 = vpop.f32.mrb[0].mxu0
    %1114 = vmatprep.mubr.f32.mxu0 0.0
    %1115 = vmatmul.mubr.f32.gmra.mrb[0].mxu0 %v1013
    %v1116 = vpop.f32.mrb[0].mxu0
    %v1117 = vadd.f32 %v989, %v1116
    %v1118 = vpop.f32.mrb[0].mxu0
    %1119 = vdwg.mxu0
    %v1120 = vld [vmem:[#allocation9] sm:$0xff]
    %v1121 = vld [vmem:[#allocation9 + $0x8] sm:$0xff]
    %v1122 = vld [vmem:[#allocation9 + $0x10] sm:$0xff]
    %v1123 = vld [vmem:[#allocation9 + $0x18] sm:$0xff]
    %v1125 = vsel %vm203, 0.0, 0
    %1127 = vmatprep.subr.mxu0 0.0
    %1128 = vmatpush1.msra.mxu0 %v1120
    %1129 = vmatprep.subr.mxu0 0.0
    %1130 = vmatpush1.msra.mxu0 %v1121
    %1131 = vmatprep.subr.mxu0 0.0
    %1132 = vmatpush1.msra.mxu0 %v1122
    %1133 = vmatprep.subr.mxu0 0.0
    %1134 = vmatpush1.msra.mxu0 %v1123
    %1135 = vmatprep.subr.mxu0 0.0
    %1136 = vmatpush1.msra.mxu0 0.0
    %1137 = vmatprep.subr.mxu0 0.0
    %1138 = vmatpush1.msra.mxu0 0.0
    %1139 = vmatprep.subr.mxu0 0.0
    %1140 = vmatpush1.msra.mxu0 0.0
    %1141 = vmatprep.subr.mxu0 0.0
    %1142 = vmatpush1.msra.mxu0 0.0
    %1143 = vmatprep.subr.mxu0 0.0
    %1144 = vmatpush1.msra.mxu0 0.0
    %1145 = vmatprep.subr.mxu0 0.0
    %1146 = vmatpush1.msra.mxu0 0.0
    %1147 = vmatprep.subr.mxu0 0.0
    %1148 = vmatpush1.msra.mxu0 0.0
    %1149 = vmatprep.subr.mxu0 0.0
    %1150 = vmatpush1.msra.mxu0 0.0
    %1151 = vmatprep.subr.mxu0 0.0
    %1152 = vmatpush1.msra.mxu0 0.0
    %1153 = vmatprep.subr.mxu0 0.0
    %1154 = vmatpush1.msra.mxu0 0.0
    %1155 = vmatprep.subr.mxu0 0.0
    %1156 = vmatpush1.msra.mxu0 0.0
    %1157 = vmatprep.subr.mxu0 0.0
    %1158 = vmatpush1.msra.mxu0 0.0
    %1159 = vmatprep.subr.mxu0 0.0
    %1160 = vmatpush1.msra.mxu0 0.0
    %1161 = vmatprep.subr.mxu0 0.0
    %1162 = vmatpush1.msra.mxu0 0.0
    %1163 = vmatprep.subr.mxu0 0.0
    %1164 = vmatpush1.msra.mxu0 0.0
    %1165 = vmatprep.subr.mxu0 0.0
    %1166 = vmatpush1.msra.mxu0 0.0
    %1167 = vmatprep.subr.mxu0 0.0
    %1168 = vmatpush1.msra.mxu0 0.0
    %1169 = vmatprep.subr.mxu0 0.0
    %1170 = vmatpush1.msra.mxu0 0.0
    %1171 = vmatprep.subr.mxu0 0.0
    %1172 = vmatpush1.msra.mxu0 0.0
    %1173 = vmatprep.subr.mxu0 0.0
    %1174 = vmatpush1.msra.mxu0 0.0
    %1175 = vmatprep.subr.mxu0 0.0
    %1176 = vmatpush1.msra.mxu0 0.0
    %1177 = vmatprep.subr.mxu0 0.0
    %1178 = vmatpush1.msra.mxu0 0.0
    %1179 = vmatprep.subr.mxu0 0.0
    %1180 = vmatpush1.msra.mxu0 0.0
    %1181 = vmatprep.subr.mxu0 0.0
    %1182 = vmatpush1.msra.mxu0 0.0
    %1183 = vmatprep.subr.mxu0 0.0
    %1184 = vmatpush1.msra.mxu0 0.0
    %1185 = vmatprep.subr.mxu0 0.0
    %1186 = vmatpush1.msra.mxu0 0.0
    %1187 = vmatprep.subr.mxu0 0.0
    %1188 = vmatpush1.msra.mxu0 0.0
    %1189 = vmatprep.subr.mxu0 0.0
    %1190 = vmatpush1.msra.mxu0 0.0
    %1191 = vmatprep.mubr.f32.mxu0 0.0
    %1192 = vmatmul.mubr.f32.gmra.mrb[0].mxu0 %v1125
    %v1193 = vpop.f32.mrb[0].mxu0
    %v1194 = vadd.f32 0.0, %v1193
    %v1195 = vpop.f32.mrb[0].mxu0
    %1196 = vmatprep.mubr.f32.mxu0 0.0
    %1197 = vmatmul.mubr.f32.gmra.mrb[0].mxu0 %v1125
    %v1198 = vpop.f32.mrb[0].mxu0
    %v1199 = vadd.f32 0.0, %v1198
    %v1200 = vpop.f32.mrb[0].mxu0
    %1201 = vdwg.mxu0
    %v1202 = vadd.f32 %v1082, %v1194
    %v1203 = vadd.f32 %v1087, %v1199
    %v1204 = vxor.u32 %v1202, 2147483648
    %v1205 = vxor.u32 %v1203, 2147483648
    %v1206 = vmul.f32 %v1204, 1.442695
    %v1207 = vpow.pop %v1206
    %v1208 = vmul.f32 %v1205, 1.442695
    %v1209 = vpow.pop %v1208
    %v1210 = vadd.f32 %v1207, 1.0
    %v1211 = vadd.f32 %v1209, 1.0
    %v1212 = vrcp.pop %v1210
    %v1213 = vmul.f32 1.0, %v1212
    %v1214 = vrcp.pop %v1211
    %v1215 = vmul.f32 1.0, %v1214
    %v1216 = vld [vmem:[#allocation12] sm:$0x1]
    %v1218 = vlaneseq
    %v1219 = vshrl.u32 %v1218, 7
    %v1220 = vsub.s32 0, %v1219
    %v1221 = vrot.slane %v1216, %v1220
    %1222 = vrot.lane.b32.xlu0 %v1221, 64
    %v1223 = vpop.permute.xlu0 %1222
    %v1225 = vadd.f32 %v1194, %v1223
    %v1226 = vadd.f32 %v1199, %v1223
    %1229 = vrot.lane.b32.xlu0 %v1225, 64
    %v1230 = vpop.permute.xlu0 %1229
    %1231 = vrot.lane.b32.xlu0 %v1226, 64
    %v1232 = vpop.permute.xlu0 %1231
    %v1235 = vmul.f32 %v1213, %v1230
    %v1236 = vmul.f32 %v1215, %v1232
    %1239 = vrot.lane.b32.xlu0 %v1235, 64
    %v1240 = vpop.permute.xlu0 %1239
    %1241 = vrot.lane.b32.xlu0 %v1236, 64
    %v1242 = vpop.permute.xlu0 %1241
    %v1245 = vadd.f32 %v1082, %v1240
    %v1246 = vadd.f32 %v1087, %v1242
    %v1247 = vtanh.pop %v1245
    %v1248 = vtanh.pop %v1246
    %v1249 = vsub.f32 1.0, %v1213
    %v1250 = vsub.f32 1.0, %v1215
    %1253 = vrot.lane.b32.xlu0 %v1247, 96
    %v1254 = vpop.permute.xlu0 %1253
    %1255 = vrot.lane.b32.xlu0 %v1248, 96
    %v1256 = vpop.permute.xlu0 %1255
    %v1259 = vmul.f32 %v1249, %v1254
    %v1260 = vmul.f32 %v1250, %v1256
    %v1261 = vmul.f32 %v1213, 0.0
    %v1262 = vmul.f32 %v1215, 0.0
    %v1263 = vadd.f32 %v1259, %v1261
    %v1264 = vadd.f32 %v1260, %v1262
    %1267 = vrot.lane.b32.xlu0 %v1263, 96
    %v1268 = vpop.permute.xlu0 %1267
    %1269 = vrot.lane.b32.xlu0 %v1264, 96
    %v1270 = vpop.permute.xlu0 %1269
    %v1271 = vsel %vm203, %v1268, 0
    %v1273 = vsel %vm203, %v1270, 0
    %1275 = vmatprep.subr.mxu0 0.0
    %1276 = vmatpush1.msra.mxu0 %v1120
    %1277 = vmatprep.subr.mxu0 0.0
    %1278 = vmatpush1.msra.mxu0 %v1121
    %1279 = vmatprep.subr.mxu0 0.0
    %1280 = vmatpush1.msra.mxu0 %v1122
    %1281 = vmatprep.subr.mxu0 0.0
    %1282 = vmatpush1.msra.mxu0 %v1123
    %1283 = vmatprep.subr.mxu0 0.0
    %1284 = vmatpush1.msra.mxu0 0.0
    %1285 = vmatprep.subr.mxu0 0.0
    %1286 = vmatpush1.msra.mxu0 0.0
    %1287 = vmatprep.subr.mxu0 0.0
    %1288 = vmatpush1.msra.mxu0 0.0
    %1289 = vmatprep.subr.mxu0 0.0
    %1290 = vmatpush1.msra.mxu0 0.0
    %1291 = vmatprep.subr.mxu0 0.0
    %1292 = vmatpush1.msra.mxu0 0.0
    %1293 = vmatprep.subr.mxu0 0.0
    %1294 = vmatpush1.msra.mxu0 0.0
    %1295 = vmatprep.subr.mxu0 0.0
    %1296 = vmatpush1.msra.mxu0 0.0
    %1297 = vmatprep.subr.mxu0 0.0
    %1298 = vmatpush1.msra.mxu0 0.0
    %1299 = vmatprep.subr.mxu0 0.0
    %1300 = vmatpush1.msra.mxu0 0.0
    %1301 = vmatprep.subr.mxu0 0.0
    %1302 = vmatpush1.msra.mxu0 0.0
    %1303 = vmatprep.subr.mxu0 0.0
    %1304 = vmatpush1.msra.mxu0 0.0
    %1305 = vmatprep.subr.mxu0 0.0
    %1306 = vmatpush1.msra.mxu0 0.0
    %1307 = vmatprep.subr.mxu0 0.0
    %1308 = vmatpush1.msra.mxu0 0.0
    %1309 = vmatprep.subr.mxu0 0.0
    %1310 = vmatpush1.msra.mxu0 0.0
    %1311 = vmatprep.subr.mxu0 0.0
    %1312 = vmatpush1.msra.mxu0 0.0
    %1313 = vmatprep.subr.mxu0 0.0
    %1314 = vmatpush1.msra.mxu0 0.0
    %1315 = vmatprep.subr.mxu0 0.0
    %1316 = vmatpush1.msra.mxu0 0.0
    %1317 = vmatprep.subr.mxu0 0.0
    %1318 = vmatpush1.msra.mxu0 0.0
    %1319 = vmatprep.subr.mxu0 0.0
    %1320 = vmatpush1.msra.mxu0 0.0
    %1321 = vmatprep.subr.mxu0 0.0
    %1322 = vmatpush1.msra.mxu0 0.0
    %1323 = vmatprep.subr.mxu0 0.0
    %1324 = vmatpush1.msra.mxu0 0.0
    %1325 = vmatprep.subr.mxu0 0.0
    %1326 = vmatpush1.msra.mxu0 0.0
    %1327 = vmatprep.subr.mxu0 0.0
    %1328 = vmatpush1.msra.mxu0 0.0
    %1329 = vmatprep.subr.mxu0 0.0
    %1330 = vmatpush1.msra.mxu0 0.0
    %1331 = vmatprep.subr.mxu0 0.0
    %1332 = vmatpush1.msra.mxu0 0.0
    %1333 = vmatprep.subr.mxu0 0.0
    %1334 = vmatpush1.msra.mxu0 0.0
    %1335 = vmatprep.subr.mxu0 0.0
    %1336 = vmatpush1.msra.mxu0 0.0
    %1337 = vmatprep.subr.mxu0 0.0
    %1338 = vmatpush1.msra.mxu0 0.0
    %1339 = vmatprep.mubr.f32.mxu0 0.0
    %1340 = vmatmul.mubr.f32.gmra.mrb[0].mxu0 %v1271
    %v1341 = vpop.f32.mrb[0].mxu0
    %v1342 = vadd.f32 0.0, %v1341
    %v1343 = vpop.f32.mrb[0].mxu0
    %1344 = vmatprep.mubr.f32.mxu0 0.0
    %1345 = vmatmul.mubr.f32.gmra.mrb[0].mxu0 %v1273
    %v1346 = vpop.f32.mrb[0].mxu0
    %v1347 = vadd.f32 0.0, %v1346
    %v1348 = vpop.f32.mrb[0].mxu0
    %1349 = vdwg.mxu0
    %vm1352 = vcmask 1043456
    %v1353 = vrot.slane %v1342, 4
    %v1354 = vrot.slane %v1347, 4
    %v1355 = vsel %vm1352, %v1353, %v1354
    %v1358 = vadd.f32 %v1087, %v1353
    %v1359 = vadd.f32 %v1092, %v1355
    %v1360 = vxor.u32 %v1358, 2147483648
    %v1361 = vxor.u32 %v1359, 2147483648
    %v1362 = vmul.f32 %v1360, 1.442695
    %v1363 = vpow.pop %v1362
    %v1364 = vmul.f32 %v1361, 1.442695
    %v1365 = vpow.pop %v1364
    %v1366 = vadd.f32 %v1363, 1.0
    %v1367 = vadd.f32 %v1365, 1.0
    %v1368 = vrcp.pop %v1366
    %v1369 = vmul.f32 1.0, %v1368
    %v1370 = vrcp.pop %v1367
    %v1371 = vmul.f32 1.0, %v1370
    %v1372 = vadd.f32 %v1342, %v1223
    %v1373 = vadd.f32 %v1347, %v1223
    %v1376 = vrot.slane %v1372, 4
    %v1377 = vrot.slane %v1373, 4
    %v1378 = vsel %vm1352, %v1376, %v1377
    %1379 = vrot.lane.b32.xlu0 %v1376, 64
    %v1380 = vpop.permute.xlu0 %1379
    %1381 = vrot.lane.b32.xlu0 %v1378, 64
    %v1382 = vpop.permute.xlu0 %1381
    %v1385 = vmul.f32 %v1369, %v1380
    %v1386 = vmul.f32 %v1371, %v1382
    %1389 = vrot.lane.b32.xlu0 %v1385, 64
    %v1390 = vpop.permute.xlu0 %1389
    %1391 = vrot.lane.b32.xlu0 %v1386, 64
    %v1392 = vpop.permute.xlu0 %1391
    %v1395 = vadd.f32 %v1087, %v1390
    %v1396 = vadd.f32 %v1092, %v1392
    %v1397 = vtanh.pop %v1395
    %v1398 = vtanh.pop %v1396
    %v1399 = vsub.f32 1.0, %v1369
    %v1400 = vsub.f32 1.0, %v1371
    %1403 = vrot.lane.b32.xlu0 %v1397, 96
    %v1404 = vpop.permute.xlu0 %1403
    %1405 = vrot.lane.b32.xlu0 %v1398, 96
    %v1406 = vpop.permute.xlu0 %1405
    %v1409 = vmul.f32 %v1399, %v1404
    %v1410 = vmul.f32 %v1400, %v1406
    %v1411 = vrot.slane %v1263, 4
    %v1412 = vrot.slane %v1264, 4
    %v1413 = vsel %vm1352, %v1411, %v1412
    %v1416 = vmul.f32 %v1369, %v1411
    %v1417 = vmul.f32 %v1371, %v1413
    %v1418 = vadd.f32 %v1409, %v1416
    %v1419 = vadd.f32 %v1410, %v1417
    %v1422 = vrot.slane %v1418, 4
    %v1423 = vrot.slane %v1419, 4
    %v1424 = vsel %vm1352, %v1422, %v1423
    %1425 = vrot.lane.b32.xlu0 %v1424, 96
    %v1426 = vpop.permute.xlu0 %1425
    %1427 = vrot.lane.b32.xlu0 %v1423, 96
    %v1428 = vpop.permute.xlu0 %1427
    %v1429 = vsel %vm203, %v1426, 0
    %v1431 = vsel %vm203, %v1428, 0
    %1433 = vmatprep.subr.mxu0 0.0
    %1434 = vmatpush1.msra.mxu0 %v1120
    %1435 = vmatprep.subr.mxu0 0.0
    %1436 = vmatpush1.msra.mxu0 %v1121
    %1437 = vmatprep.subr.mxu0 0.0
    %1438 = vmatpush1.msra.mxu0 %v1122
    %1439 = vmatprep.subr.mxu0 0.0
    %1440 = vmatpush1.msra.mxu0 %v1123
    %1441 = vmatprep.subr.mxu0 0.0
    %1442 = vmatpush1.msra.mxu0 0.0
    %1443 = vmatprep.subr.mxu0 0.0
    %1444 = vmatpush1.msra.mxu0 0.0
    %1445 = vmatprep.subr.mxu0 0.0
    %1446 = vmatpush1.msra.mxu0 0.0
    %1447 = vmatprep.subr.mxu0 0.0
    %1448 = vmatpush1.msra.mxu0 0.0
    %1449 = vmatprep.subr.mxu0 0.0
    %1450 = vmatpush1.msra.mxu0 0.0
    %1451 = vmatprep.subr.mxu0 0.0
    %1452 = vmatpush1.msra.mxu0 0.0
    %1453 = vmatprep.subr.mxu0 0.0
    %1454 = vmatpush1.msra.mxu0 0.0
    %1455 = vmatprep.subr.mxu0 0.0
    %1456 = vmatpush1.msra.mxu0 0.0
    %1457 = vmatprep.subr.mxu0 0.0
    %1458 = vmatpush1.msra.mxu0 0.0
    %1459 = vmatprep.subr.mxu0 0.0
    %1460 = vmatpush1.msra.mxu0 0.0
    %1461 = vmatprep.subr.mxu0 0.0
    %1462 = vmatpush1.msra.mxu0 0.0
    %1463 = vmatprep.subr.mxu0 0.0
    %1464 = vmatpush1.msra.mxu0 0.0
    %1465 = vmatprep.subr.mxu0 0.0
    %1466 = vmatpush1.msra.mxu0 0.0
    %1467 = vmatprep.subr.mxu0 0.0
    %1468 = vmatpush1.msra.mxu0 0.0
    %1469 = vmatprep.subr.mxu0 0.0
    %1470 = vmatpush1.msra.mxu0 0.0
    %1471 = vmatprep.subr.mxu0 0.0
    %1472 = vmatpush1.msra.mxu0 0.0
    %1473 = vmatprep.subr.mxu0 0.0
    %1474 = vmatpush1.msra.mxu0 0.0
    %1475 = vmatprep.subr.mxu0 0.0
    %1476 = vmatpush1.msra.mxu0 0.0
    %1477 = vmatprep.subr.mxu0 0.0
    %1478 = vmatpush1.msra.mxu0 0.0
    %1479 = vmatprep.subr.mxu0 0.0
    %1480 = vmatpush1.msra.mxu0 0.0
    %1481 = vmatprep.subr.mxu0 0.0
    %1482 = vmatpush1.msra.mxu0 0.0
    %1483 = vmatprep.subr.mxu0 0.0
    %1484 = vmatpush1.msra.mxu0 0.0
    %1485 = vmatprep.subr.mxu0 0.0
    %1486 = vmatpush1.msra.mxu0 0.0
    %1487 = vmatprep.subr.mxu0 0.0
    %1488 = vmatpush1.msra.mxu0 0.0
    %1489 = vmatprep.subr.mxu0 0.0
    %1490 = vmatpush1.msra.mxu0 0.0
    %1491 = vmatprep.subr.mxu0 0.0
    %1492 = vmatpush1.msra.mxu0 0.0
    %1493 = vmatprep.subr.mxu0 0.0
    %1494 = vmatpush1.msra.mxu0 0.0
    %1495 = vmatprep.subr.mxu0 0.0
    %1496 = vmatpush1.msra.mxu0 0.0
    %1497 = vmatprep.mubr.f32.mxu0 0.0
    %1498 = vmatmul.mubr.f32.gmra.mrb[0].mxu0 %v1429
    %v1499 = vpop.f32.mrb[0].mxu0
    %v1500 = vadd.f32 0.0, %v1499
    %v1501 = vpop.f32.mrb[0].mxu0
    %1502 = vmatprep.mubr.f32.mxu0 0.0
    %1503 = vmatmul.mubr.f32.gmra.mrb[0].mxu0 %v1431
    %v1504 = vpop.f32.mrb[0].mxu0
    %v1505 = vadd.f32 0.0, %v1504
    %v1506 = vpop.f32.mrb[0].mxu0
    %1507 = vdwg.mxu0
    %v1508 = vadd.f32 %v1097, %v1500
    %v1509 = vadd.f32 %v1102, %v1505
    %v1510 = vxor.u32 %v1508, 2147483648
    %v1511 = vxor.u32 %v1509, 2147483648
    %v1512 = vmul.f32 %v1510, 1.442695
    %v1513 = vpow.pop %v1512
    %v1514 = vmul.f32 %v1511, 1.442695
    %v1515 = vpow.pop %v1514
    %v1516 = vadd.f32 %v1513, 1.0
    %v1517 = vadd.f32 %v1515, 1.0
    %v1518 = vrcp.pop %v1516
    %v1519 = vmul.f32 1.0, %v1518
    %v1520 = vrcp.pop %v1517
    %v1521 = vmul.f32 1.0, %v1520
    %v1522 = vadd.f32 %v1500, %v1223
    %v1523 = vadd.f32 %v1505, %v1223
    %1526 = vrot.lane.b32.xlu0 %v1522, 64
    %v1527 = vpop.permute.xlu0 %1526
    %1528 = vrot.lane.b32.xlu0 %v1523, 64
    %v1529 = vpop.permute.xlu0 %1528
    %v1532 = vmul.f32 %v1519, %v1527
    %v1533 = vmul.f32 %v1521, %v1529
    %1536 = vrot.lane.b32.xlu0 %v1532, 64
    %v1537 = vpop.permute.xlu0 %1536
    %1538 = vrot.lane.b32.xlu0 %v1533, 64
    %v1539 = vpop.permute.xlu0 %1538
    %v1542 = vadd.f32 %v1097, %v1537
    %v1543 = vadd.f32 %v1102, %v1539
    %v1544 = vtanh.pop %v1542
    %v1545 = vtanh.pop %v1543
    %v1546 = vsub.f32 1.0, %v1519
    %v1547 = vsub.f32 1.0, %v1521
    %1550 = vrot.lane.b32.xlu0 %v1544, 96
    %v1551 = vpop.permute.xlu0 %1550
    %1552 = vrot.lane.b32.xlu0 %v1545, 96
    %v1553 = vpop.permute.xlu0 %1552
    %v1556 = vmul.f32 %v1546, %v1551
    %v1557 = vmul.f32 %v1547, %v1553
    %v1560 = vmul.f32 %v1519, %v1424
    %v1561 = vmul.f32 %v1521, %v1423
    %v1562 = vadd.f32 %v1556, %v1560
    %v1563 = vadd.f32 %v1557, %v1561
    %1566 = vrot.lane.b32.xlu0 %v1562, 96
    %v1567 = vpop.permute.xlu0 %1566
    %1568 = vrot.lane.b32.xlu0 %v1563, 96
    %v1569 = vpop.permute.xlu0 %1568
    %v1570 = vsel %vm203, %v1567, 0
    %v1572 = vsel %vm203, %v1569, 0
    %1574 = vmatprep.subr.mxu0 0.0
    %1575 = vmatpush1.msra.mxu0 %v1120
    %1576 = vmatprep.subr.mxu0 0.0
    %1577 = vmatpush1.msra.mxu0 %v1121
    %1578 = vmatprep.subr.mxu0 0.0
    %1579 = vmatpush1.msra.mxu0 %v1122
    %1580 = vmatprep.subr.mxu0 0.0
    %1581 = vmatpush1.msra.mxu0 %v1123
    %1582 = vmatprep.subr.mxu0 0.0
    %1583 = vmatpush1.msra.mxu0 0.0
    %1584 = vmatprep.subr.mxu0 0.0
    %1585 = vmatpush1.msra.mxu0 0.0
    %1586 = vmatprep.subr.mxu0 0.0
    %1587 = vmatpush1.msra.mxu0 0.0
    %1588 = vmatprep.subr.mxu0 0.0
    %1589 = vmatpush1.msra.mxu0 0.0
    %1590 = vmatprep.subr.mxu0 0.0
    %1591 = vmatpush1.msra.mxu0 0.0
    %1592 = vmatprep.subr.mxu0 0.0
    %1593 = vmatpush1.msra.mxu0 0.0
    %1594 = vmatprep.subr.mxu0 0.0
    %1595 = vmatpush1.msra.mxu0 0.0
    %1596 = vmatprep.subr.mxu0 0.0
    %1597 = vmatpush1.msra.mxu0 0.0
    %1598 = vmatprep.subr.mxu0 0.0
    %1599 = vmatpush1.msra.mxu0 0.0
    %1600 = vmatprep.subr.mxu0 0.0
    %1601 = vmatpush1.msra.mxu0 0.0
    %1602 = vmatprep.subr.mxu0 0.0
    %1603 = vmatpush1.msra.mxu0 0.0
    %1604 = vmatprep.subr.mxu0 0.0
    %1605 = vmatpush1.msra.mxu0 0.0
    %1606 = vmatprep.subr.mxu0 0.0
    %1607 = vmatpush1.msra.mxu0 0.0
    %1608 = vmatprep.subr.mxu0 0.0
    %1609 = vmatpush1.msra.mxu0 0.0
    %1610 = vmatprep.subr.mxu0 0.0
    %1611 = vmatpush1.msra.mxu0 0.0
    %1612 = vmatprep.subr.mxu0 0.0
    %1613 = vmatpush1.msra.mxu0 0.0
    %1614 = vmatprep.subr.mxu0 0.0
    %1615 = vmatpush1.msra.mxu0 0.0
    %1616 = vmatprep.subr.mxu0 0.0
    %1617 = vmatpush1.msra.mxu0 0.0
    %1618 = vmatprep.subr.mxu0 0.0
    %1619 = vmatpush1.msra.mxu0 0.0
    %1620 = vmatprep.subr.mxu0 0.0
    %1621 = vmatpush1.msra.mxu0 0.0
    %1622 = vmatprep.subr.mxu0 0.0
    %1623 = vmatpush1.msra.mxu0 0.0
    %1624 = vmatprep.subr.mxu0 0.0
    %1625 = vmatpush1.msra.mxu0 0.0
    %1626 = vmatprep.subr.mxu0 0.0
    %1627 = vmatpush1.msra.mxu0 0.0
    %1628 = vmatprep.subr.mxu0 0.0
    %1629 = vmatpush1.msra.mxu0 0.0
    %1630 = vmatprep.subr.mxu0 0.0
    %1631 = vmatpush1.msra.mxu0 0.0
    %1632 = vmatprep.subr.mxu0 0.0
    %1633 = vmatpush1.msra.mxu0 0.0
    %1634 = vmatprep.subr.mxu0 0.0
    %1635 = vmatpush1.msra.mxu0 0.0
    %1636 = vmatprep.subr.mxu0 0.0
    %1637 = vmatpush1.msra.mxu0 0.0
    %1638 = vmatprep.mubr.f32.mxu0 0.0
    %1639 = vmatmul.mubr.f32.gmra.mrb[0].mxu0 %v1570
    %v1640 = vpop.f32.mrb[0].mxu0
    %v1641 = vadd.f32 0.0, %v1640
    %v1642 = vpop.f32.mrb[0].mxu0
    %1643 = vmatprep.mubr.f32.mxu0 0.0
    %1644 = vmatmul.mubr.f32.gmra.mrb[0].mxu0 %v1572
    %v1645 = vpop.f32.mrb[0].mxu0
    %v1646 = vadd.f32 0.0, %v1645
    %v1647 = vpop.f32.mrb[0].mxu0
    %1648 = vdwg.mxu0
    %v1651 = vrot.slane %v1641, 4
    %v1652 = vrot.slane %v1646, 4
    %v1653 = vsel %vm1352, %v1651, %v1652
    %v1656 = vadd.f32 %v1102, %v1651
    %v1657 = vadd.f32 %v1107, %v1653
    %v1658 = vxor.u32 %v1656, 2147483648
    %v1659 = vxor.u32 %v1657, 2147483648
    %v1660 = vmul.f32 %v1658, 1.442695
    %v1661 = vpow.pop %v1660
    %v1662 = vmul.f32 %v1659, 1.442695
    %v1663 = vpow.pop %v1662
    %v1664 = vadd.f32 %v1661, 1.0
    %v1665 = vadd.f32 %v1663, 1.0
    %v1666 = vrcp.pop %v1664
    %v1667 = vmul.f32 1.0, %v1666
    %v1668 = vrcp.pop %v1665
    %v1669 = vmul.f32 1.0, %v1668
    %v1670 = vadd.f32 %v1641, %v1223
    %v1671 = vadd.f32 %v1646, %v1223
    %v1674 = vrot.slane %v1670, 4
    %v1675 = vrot.slane %v1671, 4
    %v1676 = vsel %vm1352, %v1674, %v1675
    %1677 = vrot.lane.b32.xlu0 %v1674, 64
    %v1678 = vpop.permute.xlu0 %1677
    %1679 = vrot.lane.b32.xlu0 %v1676, 64
    %v1680 = vpop.permute.xlu0 %1679
    %v1683 = vmul.f32 %v1667, %v1678
    %v1684 = vmul.f32 %v1669, %v1680
    %1687 = vrot.lane.b32.xlu0 %v1683, 64
    %v1688 = vpop.permute.xlu0 %1687
    %1689 = vrot.lane.b32.xlu0 %v1684, 64
    %v1690 = vpop.permute.xlu0 %1689
    %v1693 = vadd.f32 %v1102, %v1688
    %v1694 = vadd.f32 %v1107, %v1690
    %v1695 = vtanh.pop %v1693
    %v1696 = vtanh.pop %v1694
    %v1697 = vsub.f32 1.0, %v1667
    %v1698 = vsub.f32 1.0, %v1669
    %1701 = vrot.lane.b32.xlu0 %v1695, 96
    %v1702 = vpop.permute.xlu0 %1701
    %1703 = vrot.lane.b32.xlu0 %v1696, 96
    %v1704 = vpop.permute.xlu0 %1703
    %v1707 = vmul.f32 %v1697, %v1702
    %v1708 = vmul.f32 %v1698, %v1704
    %v1709 = vrot.slane %v1562, 4
    %v1710 = vrot.slane %v1563, 4
    %v1711 = vsel %vm1352, %v1709, %v1710
    %v1714 = vmul.f32 %v1667, %v1709
    %v1715 = vmul.f32 %v1669, %v1711
    %v1716 = vadd.f32 %v1707, %v1714
    %v1717 = vadd.f32 %v1708, %v1715
    %v1720 = vrot.slane %v1716, 4
    %v1721 = vrot.slane %v1717, 4
    %v1722 = vsel %vm1352, %v1720, %v1721
    %1723 = vrot.lane.b32.xlu0 %v1722, 96
    %v1724 = vpop.permute.xlu0 %1723
    %1725 = vrot.lane.b32.xlu0 %v1721, 96
    %v1726 = vpop.permute.xlu0 %1725
    %v1727 = vsel %vm203, %v1724, 0
    %v1729 = vsel %vm203, %v1726, 0
    %1731 = vmatprep.subr.mxu0 0.0
    %1732 = vmatpush1.msra.mxu0 %v1120
    %1733 = vmatprep.subr.mxu0 0.0
    %1734 = vmatpush1.msra.mxu0 %v1121
    %1735 = vmatprep.subr.mxu0 0.0
    %1736 = vmatpush1.msra.mxu0 %v1122
    %1737 = vmatprep.subr.mxu0 0.0
    %1738 = vmatpush1.msra.mxu0 %v1123
    %1739 = vmatprep.subr.mxu0 0.0
    %1740 = vmatpush1.msra.mxu0 0.0
    %1741 = vmatprep.subr.mxu0 0.0
    %1742 = vmatpush1.msra.mxu0 0.0
    %1743 = vmatprep.subr.mxu0 0.0
    %1744 = vmatpush1.msra.mxu0 0.0
    %1745 = vmatprep.subr.mxu0 0.0
    %1746 = vmatpush1.msra.mxu0 0.0
    %1747 = vmatprep.subr.mxu0 0.0
    %1748 = vmatpush1.msra.mxu0 0.0
    %1749 = vmatprep.subr.mxu0 0.0
    %1750 = vmatpush1.msra.mxu0 0.0
    %1751 = vmatprep.subr.mxu0 0.0
    %1752 = vmatpush1.msra.mxu0 0.0
    %1753 = vmatprep.subr.mxu0 0.0
    %1754 = vmatpush1.msra.mxu0 0.0
    %1755 = vmatprep.subr.mxu0 0.0
    %1756 = vmatpush1.msra.mxu0 0.0
    %1757 = vmatprep.subr.mxu0 0.0
    %1758 = vmatpush1.msra.mxu0 0.0
    %1759 = vmatprep.subr.mxu0 0.0
    %1760 = vmatpush1.msra.mxu0 0.0
    %1761 = vmatprep.subr.mxu0 0.0
    %1762 = vmatpush1.msra.mxu0 0.0
    %1763 = vmatprep.subr.mxu0 0.0
    %1764 = vmatpush1.msra.mxu0 0.0
    %1765 = vmatprep.subr.mxu0 0.0
    %1766 = vmatpush1.msra.mxu0 0.0
    %1767 = vmatprep.subr.mxu0 0.0
    %1768 = vmatpush1.msra.mxu0 0.0
    %1769 = vmatprep.subr.mxu0 0.0
    %1770 = vmatpush1.msra.mxu0 0.0
    %1771 = vmatprep.subr.mxu0 0.0
    %1772 = vmatpush1.msra.mxu0 0.0
    %1773 = vmatprep.subr.mxu0 0.0
    %1774 = vmatpush1.msra.mxu0 0.0
    %1775 = vmatprep.subr.mxu0 0.0
    %1776 = vmatpush1.msra.mxu0 0.0
    %1777 = vmatprep.subr.mxu0 0.0
    %1778 = vmatpush1.msra.mxu0 0.0
    %1779 = vmatprep.subr.mxu0 0.0
    %1780 = vmatpush1.msra.mxu0 0.0
    %1781 = vmatprep.subr.mxu0 0.0
    %1782 = vmatpush1.msra.mxu0 0.0
    %1783 = vmatprep.subr.mxu0 0.0
    %1784 = vmatpush1.msra.mxu0 0.0
    %1785 = vmatprep.subr.mxu0 0.0
    %1786 = vmatpush1.msra.mxu0 0.0
    %1787 = vmatprep.subr.mxu0 0.0
    %1788 = vmatpush1.msra.mxu0 0.0
    %1789 = vmatprep.subr.mxu0 0.0
    %1790 = vmatpush1.msra.mxu0 0.0
    %1791 = vmatprep.subr.mxu0 0.0
    %1792 = vmatpush1.msra.mxu0 0.0
    %1793 = vmatprep.subr.mxu0 0.0
    %1794 = vmatpush1.msra.mxu0 0.0
    %1795 = vmatprep.mubr.f32.mxu0 0.0
    %1796 = vmatmul.mubr.f32.gmra.mrb[0].mxu0 %v1727
    %v1797 = vpop.f32.mrb[0].mxu0
    %v1798 = vadd.f32 0.0, %v1797
    %v1799 = vpop.f32.mrb[0].mxu0
    %1800 = vmatprep.mubr.f32.mxu0 0.0
    %1801 = vmatmul.mubr.f32.gmra.mrb[0].mxu0 %v1729
    %v1802 = vpop.f32.mrb[0].mxu0
    %v1803 = vadd.f32 0.0, %v1802
    %v1804 = vpop.f32.mrb[0].mxu0
    %1805 = vdwg.mxu0
    %v1806 = vadd.f32 %v1112, %v1798
    %v1807 = vadd.f32 %v1117, %v1803
    %v1808 = vxor.u32 %v1806, 2147483648
    %v1809 = vxor.u32 %v1807, 2147483648
    %v1810 = vmul.f32 %v1808, 1.442695
    %v1811 = vpow.pop %v1810
    %v1812 = vmul.f32 %v1809, 1.442695
    %v1813 = vpow.pop %v1812
    %v1814 = vadd.f32 %v1811, 1.0
    %v1815 = vadd.f32 %v1813, 1.0
    %v1816 = vrcp.pop %v1814
    %v1817 = vmul.f32 1.0, %v1816
    %v1818 = vrcp.pop %v1815
    %v1819 = vmul.f32 1.0, %v1818
    %v1820 = vadd.f32 %v1798, %v1223
    %v1821 = vadd.f32 %v1803, %v1223
    %1824 = vrot.lane.b32.xlu0 %v1820, 64
    %v1825 = vpop.permute.xlu0 %1824
    %1826 = vrot.lane.b32.xlu0 %v1821, 64
    %v1827 = vpop.permute.xlu0 %1826
    %v1830 = vmul.f32 %v1817, %v1825
    %v1831 = vmul.f32 %v1819, %v1827
    %1834 = vrot.lane.b32.xlu0 %v1830, 64
    %v1835 = vpop.permute.xlu0 %1834
    %1836 = vrot.lane.b32.xlu0 %v1831, 64
    %v1837 = vpop.permute.xlu0 %1836
    %v1840 = vadd.f32 %v1112, %v1835
    %v1841 = vadd.f32 %v1117, %v1837
    %v1842 = vtanh.pop %v1840
    %v1843 = vtanh.pop %v1841
    %v1844 = vsub.f32 1.0, %v1817
    %v1845 = vsub.f32 1.0, %v1819
    %1848 = vrot.lane.b32.xlu0 %v1842, 96
    %v1849 = vpop.permute.xlu0 %1848
    %1850 = vrot.lane.b32.xlu0 %v1843, 96
    %v1851 = vpop.permute.xlu0 %1850
    %v1854 = vmul.f32 %v1844, %v1849
    %v1855 = vmul.f32 %v1845, %v1851
    %v1858 = vmul.f32 %v1817, %v1722
    %v1859 = vmul.f32 %v1819, %v1721
    %v1860 = vadd.f32 %v1854, %v1858
    %v1861 = vadd.f32 %v1855, %v1859
    %v1862 = vld [vmem:[%s11] sm:$0xff]
    %v1863 = vld [vmem:[%s11 + $0x8] sm:$0xff]
    %v1864 = vld [vmem:[%s11 + $0x10] sm:$0xff]
    %v1865 = vld [vmem:[%s11 + $0x18] sm:$0xff]
    %v1866 = vld [vmem:[#allocation13] sm:$0x1]
    %v1868 = vlaneseq
    %v1869 = vshrl.u32 %v1868, 7
    %v1870 = vsub.s32 0, %v1869
    %v1871 = vrot.slane %v1866, %v1870
    %1875 = vrot.lane.b32.xlu0 %v1860, 96
    %v1876 = vpop.permute.xlu0 %1875
    %1877 = vrot.lane.b32.xlu0 %v1861, 96
    %v1878 = vpop.permute.xlu0 %1877
    %v1879 = vsel %vm203, %v1876, 0
    %v1881 = vsel %vm203, %v1878, 0
    %1883 = vmatprep.subr.mxu0 0.0
    %1884 = vmatpush1.msra.mxu0 %v1862
    %1885 = vmatprep.subr.mxu0 0.0
    %1886 = vmatpush1.msra.mxu0 %v1863
    %1887 = vmatprep.subr.mxu0 0.0
    %1888 = vmatpush1.msra.mxu0 %v1864
    %1889 = vmatprep.subr.mxu0 0.0
    %1890 = vmatpush1.msra.mxu0 %v1865
    %1891 = vmatprep.subr.mxu0 0.0
    %1892 = vmatpush1.msra.mxu0 0.0
    %1893 = vmatprep.subr.mxu0 0.0
    %1894 = vmatpush1.msra.mxu0 0.0
    %1895 = vmatprep.subr.mxu0 0.0
    %1896 = vmatpush1.msra.mxu0 0.0
    %1897 = vmatprep.subr.mxu0 0.0
    %1898 = vmatpush1.msra.mxu0 0.0
    %1899 = vmatprep.subr.mxu0 0.0
    %1900 = vmatpush1.msra.mxu0 0.0
    %1901 = vmatprep.subr.mxu0 0.0
    %1902 = vmatpush1.msra.mxu0 0.0
    %1903 = vmatprep.subr.mxu0 0.0
    %1904 = vmatpush1.msra.mxu0 0.0
    %1905 = vmatprep.subr.mxu0 0.0
    %1906 = vmatpush1.msra.mxu0 0.0
    %1907 = vmatprep.subr.mxu0 0.0
    %1908 = vmatpush1.msra.mxu0 0.0
    %1909 = vmatprep.subr.mxu0 0.0
    %1910 = vmatpush1.msra.mxu0 0.0
    %1911 = vmatprep.subr.mxu0 0.0
    %1912 = vmatpush1.msra.mxu0 0.0
    %1913 = vmatprep.subr.mxu0 0.0
    %1914 = vmatpush1.msra.mxu0 0.0
    %1915 = vmatprep.subr.mxu0 0.0
    %1916 = vmatpush1.msra.mxu0 0.0
    %1917 = vmatprep.subr.mxu0 0.0
    %1918 = vmatpush1.msra.mxu0 0.0
    %1919 = vmatprep.subr.mxu0 0.0
    %1920 = vmatpush1.msra.mxu0 0.0
    %1921 = vmatprep.subr.mxu0 0.0
    %1922 = vmatpush1.msra.mxu0 0.0
    %1923 = vmatprep.subr.mxu0 0.0
    %1924 = vmatpush1.msra.mxu0 0.0
    %1925 = vmatprep.subr.mxu0 0.0
    %1926 = vmatpush1.msra.mxu0 0.0
    %1927 = vmatprep.subr.mxu0 0.0
    %1928 = vmatpush1.msra.mxu0 0.0
    %1929 = vmatprep.subr.mxu0 0.0
    %1930 = vmatpush1.msra.mxu0 0.0
    %1931 = vmatprep.subr.mxu0 0.0
    %1932 = vmatpush1.msra.mxu0 0.0
    %1933 = vmatprep.subr.mxu0 0.0
    %1934 = vmatpush1.msra.mxu0 0.0
    %1935 = vmatprep.subr.mxu0 0.0
    %1936 = vmatpush1.msra.mxu0 0.0
    %1937 = vmatprep.subr.mxu0 0.0
    %1938 = vmatpush1.msra.mxu0 0.0
    %1939 = vmatprep.subr.mxu0 0.0
    %1940 = vmatpush1.msra.mxu0 0.0
    %1941 = vmatprep.subr.mxu0 0.0
    %1942 = vmatpush1.msra.mxu0 0.0
    %1943 = vmatprep.subr.mxu0 0.0
    %1944 = vmatpush1.msra.mxu0 0.0
    %1945 = vmatprep.subr.mxu0 0.0
    %1946 = vmatpush1.msra.mxu0 0.0
    %1947 = vmatprep.mubr.f32.mxu0 0.0
    %1948 = vmatmul.mubr.f32.gmra.mrb[0].mxu0 %v1879
    %v1949 = vpop.f32.mrb[0].mxu0
    %v1950 = vadd.f32 %v1871, %v1949
    %v1951 = vpop.f32.mrb[0].mxu0
    %1952 = vmatprep.mubr.f32.mxu0 0.0
    %1953 = vmatmul.mubr.f32.gmra.mrb[0].mxu0 %v1881
    %v1954 = vpop.f32.mrb[0].mxu0
    %v1955 = vadd.f32 %v1871, %v1954
    %v1956 = vpop.f32.mrb[0].mxu0
    %1957 = vdwg.mxu0
    %vm1958 = vcmask 15360
    %1959 = vst.msk [vmem:[%s13] sm:$0xff] %vm1958, %v1950
    %vm1960 = vcmask 11264
    %1961 = vst.msk [vmem:[%s13 + $0x8] sm:$0xf] %vm1960, %v1955
    // Predicated region
    $region86: #{gnn_gru_forward.1} parent=1 // pred_check
      _
    $region87: #{gnn_gru_forward.1} parent=1 // pred_check_branch
      %1963 = sbr.rel (0) target = $region89
    $region88: #{gnn_gru_forward.1} parent=1 // pred_region
      _
    $region89: #{gnn_gru_forward.1} parent=1 // pred_fallthru
      _
    // Predicated region
    $region90: #{gnn_gru_forward.1} parent=1 // pred_check
      _
    $region91: #{gnn_gru_forward.1} parent=1 // pred_check_branch
      %1965 = sbr.rel (0) target = $region93
    $region92: #{gnn_gru_forward.1} parent=1 // pred_region
      _
    $region93: #{gnn_gru_forward.1} parent=1 // pred_fallthru
      _
    %1966 = vsyncpa [#allocation3], 1
    %1967 = vsyncpa [#allocation5], 1
    %1968 = vsyncpa [#allocation8], 1
    %1969 = vsyncpa [#allocation11], 1
    %1970 = vsyncpa [#allocation14], 1

</llo_original>
